<compile_context>
chip_gen: v7x
topology: tpu7x:2x2x1
jax: 0.10.0
libtpu: 0.0.40
codegen_flags: <defaults>
</compile_context>

<pallas_src>
import functools

import jax
import jax.numpy as jnp
from jax.experimental import pallas as pl
from jax.experimental.pallas import tpu as pltpu

LANE = 128     # lane width (last dim)
SUBLANE = 8    # f32 sublane count (second-to-last dim)


def _round_up(x, m):
    return ((x + m - 1) // m) * m


def _pad2d(a, rows, cols, dtype):
    """Zero-pad a 2-D array up to (rows, cols) and cast."""
    out = jnp.zeros((rows, cols), dtype)
    return out.at[: a.shape[0], : a.shape[1]].set(a.astype(dtype))


# --------------------------------------------------------------------------
# Kernel body: one batch tile of the full 3-layer MLP.
# --------------------------------------------------------------------------
def actor_kernel(x_ref, w1_ref, b1_ref, w2_ref, b2_ref, w3_ref, b3_ref, o_ref):
    cdt = w1_ref.dtype                       # compute dtype for MXU operands
    x = x_ref[...].astype(cdt)               # (TILE_B, in_size), cast in-kernel

    # linear1 + ReLU  (f32 accumulate, f32 epilogue)
    h1 = jnp.dot(x, w1_ref[...], preferred_element_type=jnp.float32) + b1_ref[...]
    h1 = jnp.maximum(h1, 0.0)

    # linear2 + ReLU
    h2 = jnp.dot(h1.astype(cdt), w2_ref[...],
                 preferred_element_type=jnp.float32) + b2_ref[...]
    h2 = jnp.maximum(h2, 0.0)

    # linear3 + tanh (tanh on EUP, f32)
    y = jnp.dot(h2.astype(cdt), w3_ref[...],
                preferred_element_type=jnp.float32) + b3_ref[...]
    o_ref[...] = jnp.tanh(y).astype(o_ref.dtype)
    # TODO(synk): fuse exploration-noise add / action clipping here
    # (pltpu.prng_seed + pltpu.prng_random_bits with a seed scalar in SMEM)
    # if the surrounding DDPG acting loop needs them.


# --------------------------------------------------------------------------
# Parameter prep: pad hidden/output dims to lane multiples, cast matmul
# operands.  Returns a dict of ARRAYS ONLY (jit-friendly pytree).
# --------------------------------------------------------------------------
def prepare_actor_params(params, compute_dtype=jnp.bfloat16):
    in_size, hidden = params["w1"].shape
    out_size = params["w3"].shape[1]
    hid_p = _round_up(hidden, LANE)
    out_p = _round_up(out_size, LANE)
    return {
        # w1's contraction (row) dim is intentionally NOT padded: the state is
        # passed unpadded along features and cast inside the kernel.
        "w1": _pad2d(params["w1"], in_size, hid_p, compute_dtype),
        "b1": _pad2d(params["b1"], 1, hid_p, jnp.float32),
        "w2": _pad2d(params["w2"], hid_p, hid_p, compute_dtype),
        "b2": _pad2d(params["b2"], 1, hid_p, jnp.float32),
        "w3": _pad2d(params["w3"], hid_p, out_p, compute_dtype),
        "b3": _pad2d(params["b3"], 1, out_p, jnp.float32),
    }


# --------------------------------------------------------------------------
# Wrapper: pad batch only, launch the batch-tiled pallas_call, slice result.
# --------------------------------------------------------------------------
@functools.partial(jax.jit, static_argnames=("out_size", "tile_b"))
def actor_forward(state, prepared, *, out_size, tile_b=None):
    B, in_size = state.shape
    w1, b1 = prepared["w1"], prepared["b1"]
    w2, b2 = prepared["w2"], prepared["b2"]
    w3, b3 = prepared["w3"], prepared["b3"]
    hid_p = w1.shape[1]
    out_p = w3.shape[1]

    # Batch tiling:
    #  * large batches: 1024-row tiles (amortize per-grid-step overhead, still
    #    a few MB live set -> well inside scoped VMEM on v5e/v6e/v7x),
    #  * moderate batches: split into >=2 tiles so both v7x TCs get work,
    #  * tiny batches: one sublane-aligned tile.
    if tile_b is None:
        if B >= 2048:
            tile_b = 1024
        elif B > 16:
            tile_b = _round_up(-(-B // 2), SUBLANE)   # ceil(B/2), >=2 tiles
        else:
            tile_b = _round_up(max(B, 1), SUBLANE)
    tile_b = max(SUBLANE, _round_up(tile_b, SUBLANE))
    b_pad = _round_up(B, tile_b)
    n_tiles = b_pad // tile_b

    # Pad the batch axis only; features stay unpadded f32 (cast in-kernel).
    x = state if b_pad == B else jnp.pad(state, ((0, b_pad - B), (0, 0)))

    flops = 2 * b_pad * (in_size * hid_p + hid_p * hid_p + hid_p * out_p)
    bytes_accessed = int(
        x.size * x.dtype.itemsize
        + sum(int(a.size) * a.dtype.itemsize for a in (w1, b1, w2, b2, w3, b3))
        + b_pad * out_p * 4)
    cost = pl.CostEstimate(flops=flops,
                           transcendentals=b_pad * out_p,
                           bytes_accessed=bytes_accessed)

    def resident(shape):
        # Weights/biases: constant block index -> fetched once, VMEM-resident
        # while batch tiles stream through.
        return pl.BlockSpec(shape, lambda i: (0, 0))

    out = pl.pallas_call(
        actor_kernel,
        out_shape=jax.ShapeDtypeStruct((b_pad, out_p), jnp.float32),
        grid=(n_tiles,),
        in_specs=[
            pl.BlockSpec((tile_b, in_size), lambda i: (i, 0)),  # state tiles
            resident(w1.shape),                                 # w1
            resident(b1.shape),                                 # b1
            resident(w2.shape),                                 # w2
            resident(b2.shape),                                 # b2
            resident(w3.shape),                                 # w3
            resident(b3.shape),                                 # b3
        ],
        out_specs=pl.BlockSpec((tile_b, out_p), lambda i: (i, 0)),
        compiler_params=pltpu.CompilerParams(
            dimension_semantics=("parallel",)),     # shard batch tiles across TCs
        cost_estimate=cost,
    )(x, w1, b1, w2, b2, w3, b3)

    return out[:B, :out_size]


# --------------------------------------------------------------------------
# Init (mimics nn.Linear U(-1/sqrt(fan_in), 1/sqrt(fan_in))) and reference.
# --------------------------------------------------------------------------
def init_actor_params(key, input_size, hidden_size, output_size):
    def linear(k, fan_in, fan_out):
        kw, kb = jax.random.split(k)
        bound = 1.0 / jnp.sqrt(fan_in)
        w = jax.random.uniform(kw, (fan_in, fan_out), jnp.float32, -bound, bound)
        b = jax.random.uniform(kb, (1, fan_out), jnp.float32, -bound, bound)
        return w, b

    k1, k2, k3 = jax.random.split(key, 3)
    w1, b1 = linear(k1, input_size, hidden_size)
    w2, b2 = linear(k2, hidden_size, hidden_size)
    w3, b3 = linear(k3, hidden_size, output_size)
    return {"w1": w1, "b1": b1, "w2": w2, "b2": b2, "w3": w3, "b3": b3}


def actor_reference(state, params):
    h1 = jnp.maximum(state @ params["w1"] + params["b1"], 0.0)
    h2 = jnp.maximum(h1 @ params["w2"] + params["b2"], 0.0)
    return jnp.tanh(h2 @ params["w3"] + params["b3"])


if __name__ == "__main__":
    key = jax.random.PRNGKey(0)
    k_params, k_state, k_big = jax.random.split(key, 3)

    batch = 2
    input_size = 8       # state dimension
    hidden_size = 32
    output_size = 4      # action dimension

    params = init_actor_params(k_params, input_size, hidden_size, output_size)
    state = jax.random.normal(k_state, (batch, input_size), dtype=jnp.float32)

    # --- f32 path, single tile (matches the PyTorch forward up to
    #     accumulation order); pin matmul precision so kernel and reference
    #     use the same f32 path. -------------------------------------------
    with jax.default_matmul_precision("highest"):
        prepared_f32 = prepare_actor_params(params, compute_dtype=jnp.float32)
        out = jax.block_until_ready(
            actor_forward(state, prepared_f32, out_size=output_size))
        ref = actor_reference(state, params)
    assert out.shape == (batch, output_size)
    assert jnp.allclose(out, ref, atol=1e-4, rtol=1e-4), "f32 path mismatch"

    # --- bf16 MXU path with a multi-tile parallel batch grid --------------
    big_batch = 300
    state_big = jax.random.normal(k_big, (big_batch, input_size), dtype=jnp.float32)
    ref_big = actor_reference(state_big, params)
    prepared_bf16 = prepare_actor_params(params, compute_dtype=jnp.bfloat16)

    # explicit tile size (3 tiles of 128 rows)
    out_big = jax.block_until_ready(
        actor_forward(state_big, prepared_bf16, out_size=output_size, tile_b=128))
    assert out_big.shape == (big_batch, output_size)
    assert jnp.allclose(out_big, ref_big, atol=5e-2), "bf16 path mismatch (tile_b=128)"

    # auto tile selection (splits into >=2 tiles so both v7x cores engage)
    out_auto = jax.block_until_ready(
        actor_forward(state_big, prepared_bf16, out_size=output_size))
    assert out_auto.shape == (big_batch, output_size)
    assert jnp.allclose(out_auto, ref_big, atol=5e-2), "bf16 path mismatch (auto tile)"

    print("KERNEL_OK")
</pallas_src>

<mosaic_0001>
module attributes {stable_mosaic.version = 11 : i64} {
  func.func @actor_kernel(%arg0: i32, %arg1: memref<8x8xf32, #tpu.memory_space<vmem>>, %arg2: memref<8x128xf32, #tpu.memory_space<vmem>>, %arg3: memref<1x128xf32, #tpu.memory_space<vmem>>, %arg4: memref<128x128xf32, #tpu.memory_space<vmem>>, %arg5: memref<1x128xf32, #tpu.memory_space<vmem>>, %arg6: memref<128x128xf32, #tpu.memory_space<vmem>>, %arg7: memref<1x128xf32, #tpu.memory_space<vmem>>, %arg8: memref<8x128xf32, #tpu.memory_space<vmem>>) attributes {dimension_semantics = [#tpu.dimension_semantics<parallel>], iteration_bounds = array<i64: 1>, scalar_prefetch = 0 : i64, scratch_operands = 0 : i64, tpu.core_type = #tpu.core_type<tc>, window_params = [{transform_indices = @transform_0, window_bounds = array<i64: 8, 8>}, {pipeline_mode = #tpu.pipeline_mode<synchronous>, transform_indices = @transform_1, window_bounds = array<i64: 8, 128>}, {pipeline_mode = #tpu.pipeline_mode<synchronous>, transform_indices = @transform_2, window_bounds = array<i64: 1, 128>}, {pipeline_mode = #tpu.pipeline_mode<synchronous>, transform_indices = @transform_3, window_bounds = array<i64: 128, 128>}, {pipeline_mode = #tpu.pipeline_mode<synchronous>, transform_indices = @transform_4, window_bounds = array<i64: 1, 128>}, {pipeline_mode = #tpu.pipeline_mode<synchronous>, transform_indices = @transform_5, window_bounds = array<i64: 128, 128>}, {pipeline_mode = #tpu.pipeline_mode<synchronous>, transform_indices = @transform_6, window_bounds = array<i64: 1, 128>}, {transform_indices = @transform_7, window_bounds = array<i64: 8, 128>}]} {
    %c0 = arith.constant 0 : index
    %c0_0 = arith.constant 0 : index
    %0 = vector.load %arg1[%c0, %c0_0] : memref<8x8xf32, #tpu.memory_space<vmem>>, vector<8x8xf32>
    %c0_1 = arith.constant 0 : index
    %c0_2 = arith.constant 0 : index
    %1 = vector.load %arg2[%c0_1, %c0_2] : memref<8x128xf32, #tpu.memory_space<vmem>>, vector<8x128xf32>
    %cst = arith.constant dense<0.000000e+00> : vector<8x128xf32>
    %2 = tpu.matmul %0, %1, %cst {dimension_numbers = #tpu.dot_dimension_numbers<[1], [0], [0], [1], [0, 0, 1, 1], [], []>, precision = #tpu.contract_precision<fp32>} : vector<8x8xf32>, vector<8x128xf32>, vector<8x128xf32> -> vector<8x128xf32>
    %c0_3 = arith.constant 0 : index
    %c0_4 = arith.constant 0 : index
    %3 = vector.load %arg3[%c0_3, %c0_4] : memref<1x128xf32, #tpu.memory_space<vmem>>, vector<1x128xf32>
    %4 = vector.broadcast %3 : vector<1x128xf32> to vector<8x128xf32>
    %5 = arith.addf %2, %4 : vector<8x128xf32>
    %cst_5 = arith.constant 0.000000e+00 : f32
    %6 = vector.broadcast %cst_5 : f32 to vector<8x128xf32>
    %7 = arith.maximumf %5, %6 : vector<8x128xf32>
    %c0_6 = arith.constant 0 : index
    %c0_7 = arith.constant 0 : index
    %8 = vector.load %arg4[%c0_6, %c0_7] : memref<128x128xf32, #tpu.memory_space<vmem>>, vector<128x128xf32>
    %cst_8 = arith.constant dense<0.000000e+00> : vector<8x128xf32>
    %9 = tpu.matmul %7, %8, %cst_8 {dimension_numbers = #tpu.dot_dimension_numbers<[1], [0], [0], [1], [0, 0, 1, 1], [], []>, precision = #tpu.contract_precision<fp32>} : vector<8x128xf32>, vector<128x128xf32>, vector<8x128xf32> -> vector<8x128xf32>
    %c0_9 = arith.constant 0 : index
    %c0_10 = arith.constant 0 : index
    %10 = vector.load %arg5[%c0_9, %c0_10] : memref<1x128xf32, #tpu.memory_space<vmem>>, vector<1x128xf32>
    %11 = vector.broadcast %10 : vector<1x128xf32> to vector<8x128xf32>
    %12 = arith.addf %9, %11 : vector<8x128xf32>
    %cst_11 = arith.constant 0.000000e+00 : f32
    %13 = vector.broadcast %cst_11 : f32 to vector<8x128xf32>
    %14 = arith.maximumf %12, %13 : vector<8x128xf32>
    %c0_12 = arith.constant 0 : index
    %c0_13 = arith.constant 0 : index
    %15 = vector.load %arg6[%c0_12, %c0_13] : memref<128x128xf32, #tpu.memory_space<vmem>>, vector<128x128xf32>
    %cst_14 = arith.constant dense<0.000000e+00> : vector<8x128xf32>
    %16 = tpu.matmul %14, %15, %cst_14 {dimension_numbers = #tpu.dot_dimension_numbers<[1], [0], [0], [1], [0, 0, 1, 1], [], []>, precision = #tpu.contract_precision<fp32>} : vector<8x128xf32>, vector<128x128xf32>, vector<8x128xf32> -> vector<8x128xf32>
    %c0_15 = arith.constant 0 : index
    %c0_16 = arith.constant 0 : index
    %17 = vector.load %arg7[%c0_15, %c0_16] : memref<1x128xf32, #tpu.memory_space<vmem>>, vector<1x128xf32>
    %18 = vector.broadcast %17 : vector<1x128xf32> to vector<8x128xf32>
    %19 = arith.addf %16, %18 : vector<8x128xf32>
    %20 = math.tanh %19 : vector<8x128xf32>
    %c0_17 = arith.constant 0 : index
    %c0_18 = arith.constant 0 : index
    %21 = vector.load %arg8[%c0_17, %c0_18] : memref<8x128xf32, #tpu.memory_space<vmem>>, vector<8x128xf32>
    tpu.vector_store %arg8[%c0_17, %c0_18], %20 {strides = array<i32>} : memref<8x128xf32, #tpu.memory_space<vmem>>, vector<8x128xf32>,
    return
  }
  func.func @transform_0(%arg0: i32) -> (i32, i32) {
    %c0_i32 = arith.constant 0 : i32
    %c0_i32_0 = arith.constant 0 : i32
    return %arg0, %c0_i32 : i32, i32
  }
  func.func @transform_1(%arg0: i32) -> (i32, i32) {
    %c0_i32 = arith.constant 0 : i32
    %c0_i32_0 = arith.constant 0 : i32
    %c0_i32_1 = arith.constant 0 : i32
    return %c0_i32, %c0_i32_0 : i32, i32
  }
  func.func @transform_2(%arg0: i32) -> (i32, i32) {
    %c0_i32 = arith.constant 0 : i32
    %c0_i32_0 = arith.constant 0 : i32
    %c0_i32_1 = arith.constant 0 : i32
    return %c0_i32, %c0_i32_0 : i32, i32
  }
  func.func @transform_3(%arg0: i32) -> (i32, i32) {
    %c0_i32 = arith.constant 0 : i32
    %c0_i32_0 = arith.constant 0 : i32
    %c0_i32_1 = arith.constant 0 : i32
    return %c0_i32, %c0_i32_0 : i32, i32
  }
  func.func @transform_4(%arg0: i32) -> (i32, i32) {
    %c0_i32 = arith.constant 0 : i32
    %c0_i32_0 = arith.constant 0 : i32
    %c0_i32_1 = arith.constant 0 : i32
    return %c0_i32, %c0_i32_0 : i32, i32
  }
  func.func @transform_5(%arg0: i32) -> (i32, i32) {
    %c0_i32 = arith.constant 0 : i32
    %c0_i32_0 = arith.constant 0 : i32
    %c0_i32_1 = arith.constant 0 : i32
    return %c0_i32, %c0_i32_0 : i32, i32
  }
  func.func @transform_6(%arg0: i32) -> (i32, i32) {
    %c0_i32 = arith.constant 0 : i32
    %c0_i32_0 = arith.constant 0 : i32
    %c0_i32_1 = arith.constant 0 : i32
    return %c0_i32, %c0_i32_0 : i32, i32
  }
  func.func @transform_7(%arg0: i32) -> (i32, i32) {
    %c0_i32 = arith.constant 0 : i32
    %c0_i32_0 = arith.constant 0 : i32
    return %arg0, %c0_i32 : i32, i32
  }
}

</mosaic_0001>

<llo_original>
// kernel: actor_forward.1
$region0: #{actor_forward.1}
  #allocation0 [shape = 'u32[]', space=smem, size = 0x4, offset = 0x4, fixed_abs, tag = 'smem constant byte address 0x4 - core index']
  #allocation1 [shape = 'u32[144,128]{1,0:T(1,128)}', space=vmem, size = 0x12000, scoped, tag = 'internal scratch']
  %s0 = inlined_call_operand.vmem [shape: f32[8,8], index: 0, kind: input, shape index: {}]
  %s1 = inlined_call_operand.vmem [shape: f32[8,128], index: 1, kind: input, shape index: {}]
  %s2 = inlined_call_operand.vmem [shape: f32[1,128], index: 2, kind: input, shape index: {}]
  %s3 = inlined_call_operand.hbm [shape: f32[128,128], index: 3, kind: input, shape index: {}]
  %s4 = inlined_call_operand.vmem [shape: f32[1,128], index: 4, kind: input, shape index: {}]
  %s5 = inlined_call_operand.hbm [shape: f32[128,128], index: 5, kind: input, shape index: {}]
  %s6 = inlined_call_operand.vmem [shape: f32[1,128], index: 6, kind: input, shape index: {}]
  %s7 = inlined_call_operand.vmem [shape: f32[8,128], index: 7, kind: output, shape index: {}]
  %s8 = sld [smem:[#allocation0]]
  $region46: #{actor_forward.1} parent=0
    _
  %s10 = ssub.s32 1, %s8
  %s11 = scalar_select 0, %s10, %s8
  $region1: #{actor_forward.1} parent=0
    #allocation2 [shape = 'u8[65536]{0}', space=vmem, size = 0x10000, scoped, tag = 'input window, operand 3, single buffered']
    #allocation3 [shape = 's32[1]{0}', space=sflag, size = 0x4, scoped, tag = 'scoped memory for actor_forward.1']
    #allocation4 [shape = 'u8[65536]{0}', space=vmem, size = 0x10000, scoped, tag = 'input window, operand 5, single buffered']
    #allocation5 [shape = 's32[1]{0}', space=sflag, size = 0x4, scoped, tag = 'scoped memory for actor_forward.1']
    %12 = vsyncpa [#allocation3], 0
    %13 = vsyncpa [#allocation5], 0
    // Predicated region
    $region2: #{actor_forward.1} parent=1 // pred_check
      _
    $region3: #{actor_forward.1} parent=1 // pred_check_branch
      %15 = sbr.rel (0) target = $region5
    $region4: #{actor_forward.1} parent=1 // pred_region
      _
    $region5: #{actor_forward.1} parent=1 // pred_fallthru
      _
    // Predicated region
    $region6: #{actor_forward.1} parent=1 // pred_check
      _
    $region7: #{actor_forward.1} parent=1 // pred_check_branch
      %17 = sbr.rel (0) target = $region9
    $region8: #{actor_forward.1} parent=1 // pred_region
      _
    $region9: #{actor_forward.1} parent=1 // pred_fallthru
      _
    // Predicated region
    $region10: #{actor_forward.1} parent=1 // pred_check
      _
    $region11: #{actor_forward.1} parent=1 // pred_check_branch
      %19 = sbr.rel (0) target = $region13
    $region12: #{actor_forward.1} parent=1 // pred_region
      _
    $region13: #{actor_forward.1} parent=1 // pred_fallthru
      _
    // Predicated region
    $region14: #{actor_forward.1} parent=1 // pred_check
      _
    $region15: #{actor_forward.1} parent=1 // pred_check_branch
      %21 = sbr.rel (0) target = $region17
    $region16: #{actor_forward.1} parent=1 // pred_region
      %s23 = ssub.s32 2048, 2048
      %24 = vsyncadd [#allocation3], %s23
      %s25 = sshll.u32 [#allocation2], 4
      %s26 = int_to_ptr.vmem [resolvable:$true] %s25
      %31 = dma.hbm_to_vmem [thread:$0]  %s3, 2048, %s26, [#allocation3], 128, 128, 8
    $region17: #{actor_forward.1} parent=1 // pred_fallthru
      _
    // Predicated region
    $region18: #{actor_forward.1} parent=1 // pred_check
      _
    $region19: #{actor_forward.1} parent=1 // pred_check_branch
      %33 = sbr.rel (0) target = $region21
    $region20: #{actor_forward.1} parent=1 // pred_region
      _
    $region21: #{actor_forward.1} parent=1 // pred_fallthru
      _
    // Predicated region
    $region22: #{actor_forward.1} parent=1 // pred_check
      _
    $region23: #{actor_forward.1} parent=1 // pred_check_branch
      %35 = sbr.rel (0) target = $region25
    $region24: #{actor_forward.1} parent=1 // pred_region
      %s37 = ssub.s32 2048, 2048
      %38 = vsyncadd [#allocation5], %s37
      %s39 = sshll.u32 [#allocation4], 4
      %s40 = int_to_ptr.vmem [resolvable:$true] %s39
      %45 = dma.hbm_to_vmem [thread:$0]  %s5, 2048, %s40, [#allocation5], 128, 128, 8
    $region25: #{actor_forward.1} parent=1 // pred_fallthru
      _
    // Predicated region
    $region26: #{actor_forward.1} parent=1 // pred_check
      _
    $region27: #{actor_forward.1} parent=1 // pred_check_branch
      %47 = sbr.rel (0) target = $region29
    $region28: #{actor_forward.1} parent=1 // pred_region
      _
    $region29: #{actor_forward.1} parent=1 // pred_fallthru
      _
    // Predicated region
    $region30: #{actor_forward.1} parent=1 // pred_check
      _
    $region31: #{actor_forward.1} parent=1 // pred_check_branch
      %49 = sbr.rel (0) target = $region33
    $region32: #{actor_forward.1} parent=1 // pred_region
      %50 = dma.done [#allocation3], 2048
    $region33: #{actor_forward.1} parent=1 // pred_fallthru
      _
    // Predicated region
    $region34: #{actor_forward.1} parent=1 // pred_check
      _
    $region35: #{actor_forward.1} parent=1 // pred_check_branch
      %52 = sbr.rel (0) target = $region37
    $region36: #{actor_forward.1} parent=1 // pred_region
      %53 = dma.done [#allocation5], 2048
    $region37: #{actor_forward.1} parent=1 // pred_fallthru
      _
    %v54 = vld [vmem:[%s0] sm:$0xff]
    %v55 = vld [vmem:[%s1] sm:$0xff]
    %v56 = vld [vmem:[%s2] sm:$0x1]
    %v58 = vlaneseq
    %v59 = vshrl.u32 %v58, 7
    %v60 = vsub.s32 0, %v59
    %v61 = vrot.slane %v56, %v60
    %vm63 = vcmask 64512
    %v65 = vsel %vm63, %v54, 0
    %67 = vmatprep.subr.mxu0 0.0
    %v68 = vand.u32 %v55, 4294901760
    %69 = vmatpush1.msra.mxu0 %v68
    %70 = vmatprep.subr.mxu0 0.0
    %71 = vmatpush1.msra.mxu0 0.0
    %72 = vmatprep.subr.mxu0 0.0
    %73 = vmatpush1.msra.mxu0 0.0
    %74 = vmatprep.subr.mxu0 0.0
    %75 = vmatpush1.msra.mxu0 0.0
    %76 = vmatprep.subr.mxu0 0.0
    %77 = vmatpush1.msra.mxu0 0.0
    %78 = vmatprep.subr.mxu0 0.0
    %79 = vmatpush1.msra.mxu0 0.0
    %80 = vmatprep.subr.mxu0 0.0
    %81 = vmatpush1.msra.mxu0 0.0
    %82 = vmatprep.subr.mxu0 0.0
    %83 = vmatpush1.msra.mxu0 0.0
    %84 = vmatprep.subr.mxu0 0.0
    %85 = vmatpush1.msra.mxu0 0.0
    %86 = vmatprep.subr.mxu0 0.0
    %87 = vmatpush1.msra.mxu0 0.0
    %88 = vmatprep.subr.mxu0 0.0
    %89 = vmatpush1.msra.mxu0 0.0
    %90 = vmatprep.subr.mxu0 0.0
    %91 = vmatpush1.msra.mxu0 0.0
    %92 = vmatprep.subr.mxu0 0.0
    %93 = vmatpush1.msra.mxu0 0.0
    %94 = vmatprep.subr.mxu0 0.0
    %95 = vmatpush1.msra.mxu0 0.0
    %96 = vmatprep.subr.mxu0 0.0
    %97 = vmatpush1.msra.mxu0 0.0
    %98 = vmatprep.subr.mxu0 0.0
    %99 = vmatpush1.msra.mxu0 0.0
    %100 = vmatprep.subr.mxu0 0.0
    %101 = vmatpush1.msra.mxu0 0.0
    %102 = vmatprep.subr.mxu0 0.0
    %103 = vmatpush1.msra.mxu0 0.0
    %104 = vmatprep.subr.mxu0 0.0
    %105 = vmatpush1.msra.mxu0 0.0
    %106 = vmatprep.subr.mxu0 0.0
    %107 = vmatpush1.msra.mxu0 0.0
    %108 = vmatprep.subr.mxu0 0.0
    %109 = vmatpush1.msra.mxu0 0.0
    %110 = vmatprep.subr.mxu0 0.0
    %111 = vmatpush1.msra.mxu0 0.0
    %112 = vmatprep.subr.mxu0 0.0
    %113 = vmatpush1.msra.mxu0 0.0
    %114 = vmatprep.subr.mxu0 0.0
    %115 = vmatpush1.msra.mxu0 0.0
    %116 = vmatprep.subr.mxu0 0.0
    %117 = vmatpush1.msra.mxu0 0.0
    %118 = vmatprep.subr.mxu0 0.0
    %119 = vmatpush1.msra.mxu0 0.0
    %120 = vmatprep.subr.mxu0 0.0
    %121 = vmatpush1.msra.mxu0 0.0
    %122 = vmatprep.subr.mxu0 0.0
    %123 = vmatpush1.msra.mxu0 0.0
    %124 = vmatprep.subr.mxu0 0.0
    %125 = vmatpush1.msra.mxu0 0.0
    %126 = vmatprep.subr.mxu0 0.0
    %127 = vmatpush1.msra.mxu0 0.0
    %128 = vmatprep.subr.mxu0 0.0
    %129 = vmatpush1.msra.mxu0 0.0
    %130 = vmatprep.subr.mxu0 0.0
    %131 = vmatpush1.msra.mxu0 0.0
    %132 = vmatprep.mubr.f32.mxu0 0.0
    %v133 = vand.u32 %v65, 4294901760
    %v134 = vsub.f32 %v65, %v133
    %v135 = vand.u32 %v134, 4294901760
    %v136 = vsub.f32 %v134, %v135
    %v137 = vand.u32 %v136, 4294901760
    %138 = vmatmul.mubr.f32.gmra.mrb[0].mxu0 %v137
    %v139 = vpop.f32.mrb[0].mxu0
    %v140 = vadd.f32 %v61, %v139
    %v141 = vpop.f32.mrb[0].mxu0
    %142 = vdwg.mxu0
    %143 = vmatprep.subr.mxu0 0.0
    %v144 = vand.u32 %v55, 4294901760
    %v145 = vsub.f32 %v55, %v144
    %v146 = vand.u32 %v145, 4294901760
    %v147 = vsub.f32 %v145, %v146
    %v148 = vand.u32 %v147, 4294901760
    %149 = vmatpush1.msra.mxu0 %v148
    %150 = vmatprep.subr.mxu0 0.0
    %151 = vmatpush1.msra.mxu0 0.0
    %152 = vmatprep.subr.mxu0 0.0
    %153 = vmatpush1.msra.mxu0 0.0
    %154 = vmatprep.subr.mxu0 0.0
    %155 = vmatpush1.msra.mxu0 0.0
    %156 = vmatprep.subr.mxu0 0.0
    %157 = vmatpush1.msra.mxu0 0.0
    %158 = vmatprep.subr.mxu0 0.0
    %159 = vmatpush1.msra.mxu0 0.0
    %160 = vmatprep.subr.mxu0 0.0
    %161 = vmatpush1.msra.mxu0 0.0
    %162 = vmatprep.subr.mxu0 0.0
    %163 = vmatpush1.msra.mxu0 0.0
    %164 = vmatprep.subr.mxu0 0.0
    %165 = vmatpush1.msra.mxu0 0.0
    %166 = vmatprep.subr.mxu0 0.0
    %167 = vmatpush1.msra.mxu0 0.0
    %168 = vmatprep.subr.mxu0 0.0
    %169 = vmatpush1.msra.mxu0 0.0
    %170 = vmatprep.subr.mxu0 0.0
    %171 = vmatpush1.msra.mxu0 0.0
    %172 = vmatprep.subr.mxu0 0.0
    %173 = vmatpush1.msra.mxu0 0.0
    %174 = vmatprep.subr.mxu0 0.0
    %175 = vmatpush1.msra.mxu0 0.0
    %176 = vmatprep.subr.mxu0 0.0
    %177 = vmatpush1.msra.mxu0 0.0
    %178 = vmatprep.subr.mxu0 0.0
    %179 = vmatpush1.msra.mxu0 0.0
    %180 = vmatprep.subr.mxu0 0.0
    %181 = vmatpush1.msra.mxu0 0.0
    %182 = vmatprep.subr.mxu0 0.0
    %183 = vmatpush1.msra.mxu0 0.0
    %184 = vmatprep.subr.mxu0 0.0
    %185 = vmatpush1.msra.mxu0 0.0
    %186 = vmatprep.subr.mxu0 0.0
    %187 = vmatpush1.msra.mxu0 0.0
    %188 = vmatprep.subr.mxu0 0.0
    %189 = vmatpush1.msra.mxu0 0.0
    %190 = vmatprep.subr.mxu0 0.0
    %191 = vmatpush1.msra.mxu0 0.0
    %192 = vmatprep.subr.mxu0 0.0
    %193 = vmatpush1.msra.mxu0 0.0
    %194 = vmatprep.subr.mxu0 0.0
    %195 = vmatpush1.msra.mxu0 0.0
    %196 = vmatprep.subr.mxu0 0.0
    %197 = vmatpush1.msra.mxu0 0.0
    %198 = vmatprep.subr.mxu0 0.0
    %199 = vmatpush1.msra.mxu0 0.0
    %200 = vmatprep.subr.mxu0 0.0
    %201 = vmatpush1.msra.mxu0 0.0
    %202 = vmatprep.subr.mxu0 0.0
    %203 = vmatpush1.msra.mxu0 0.0
    %204 = vmatprep.subr.mxu0 0.0
    %205 = vmatpush1.msra.mxu0 0.0
    %206 = vmatprep.subr.mxu0 0.0
    %207 = vmatpush1.msra.mxu0 0.0
    %208 = vmatprep.subr.mxu0 0.0
    %209 = vmatpush1.msra.mxu0 0.0
    %210 = vmatprep.subr.mxu0 0.0
    %211 = vmatpush1.msra.mxu0 0.0
    %212 = vmatprep.mubr.f32.mxu0 0.0
    %v213 = vand.u32 %v65, 4294901760
    %214 = vmatmul.mubr.f32.gmra.mrb[0].mxu0 %v213
    %v215 = vpop.f32.mrb[0].mxu0
    %v216 = vadd.f32 %v140, %v215
    %v217 = vpop.f32.mrb[0].mxu0
    %218 = vdwg.mxu0
    %219 = vmatprep.subr.mxu0 0.0
    %v220 = vand.u32 %v55, 4294901760
    %v221 = vsub.f32 %v55, %v220
    %222 = vmatpush1.msra.mxu0 %v221
    %223 = vmatprep.subr.mxu0 0.0
    %224 = vmatpush1.msra.mxu0 0.0
    %225 = vmatprep.subr.mxu0 0.0
    %226 = vmatpush1.msra.mxu0 0.0
    %227 = vmatprep.subr.mxu0 0.0
    %228 = vmatpush1.msra.mxu0 0.0
    %229 = vmatprep.subr.mxu0 0.0
    %230 = vmatpush1.msra.mxu0 0.0
    %231 = vmatprep.subr.mxu0 0.0
    %232 = vmatpush1.msra.mxu0 0.0
    %233 = vmatprep.subr.mxu0 0.0
    %234 = vmatpush1.msra.mxu0 0.0
    %235 = vmatprep.subr.mxu0 0.0
    %236 = vmatpush1.msra.mxu0 0.0
    %237 = vmatprep.subr.mxu0 0.0
    %238 = vmatpush1.msra.mxu0 0.0
    %239 = vmatprep.subr.mxu0 0.0
    %240 = vmatpush1.msra.mxu0 0.0
    %241 = vmatprep.subr.mxu0 0.0
    %242 = vmatpush1.msra.mxu0 0.0
    %243 = vmatprep.subr.mxu0 0.0
    %244 = vmatpush1.msra.mxu0 0.0
    %245 = vmatprep.subr.mxu0 0.0
    %246 = vmatpush1.msra.mxu0 0.0
    %247 = vmatprep.subr.mxu0 0.0
    %248 = vmatpush1.msra.mxu0 0.0
    %249 = vmatprep.subr.mxu0 0.0
    %250 = vmatpush1.msra.mxu0 0.0
    %251 = vmatprep.subr.mxu0 0.0
    %252 = vmatpush1.msra.mxu0 0.0
    %253 = vmatprep.subr.mxu0 0.0
    %254 = vmatpush1.msra.mxu0 0.0
    %255 = vmatprep.subr.mxu0 0.0
    %256 = vmatpush1.msra.mxu0 0.0
    %257 = vmatprep.subr.mxu0 0.0
    %258 = vmatpush1.msra.mxu0 0.0
    %259 = vmatprep.subr.mxu0 0.0
    %260 = vmatpush1.msra.mxu0 0.0
    %261 = vmatprep.subr.mxu0 0.0
    %262 = vmatpush1.msra.mxu0 0.0
    %263 = vmatprep.subr.mxu0 0.0
    %264 = vmatpush1.msra.mxu0 0.0
    %265 = vmatprep.subr.mxu0 0.0
    %266 = vmatpush1.msra.mxu0 0.0
    %267 = vmatprep.subr.mxu0 0.0
    %268 = vmatpush1.msra.mxu0 0.0
    %269 = vmatprep.subr.mxu0 0.0
    %270 = vmatpush1.msra.mxu0 0.0
    %271 = vmatprep.subr.mxu0 0.0
    %272 = vmatpush1.msra.mxu0 0.0
    %273 = vmatprep.subr.mxu0 0.0
    %274 = vmatpush1.msra.mxu0 0.0
    %275 = vmatprep.subr.mxu0 0.0
    %276 = vmatpush1.msra.mxu0 0.0
    %277 = vmatprep.subr.mxu0 0.0
    %278 = vmatpush1.msra.mxu0 0.0
    %279 = vmatprep.subr.mxu0 0.0
    %280 = vmatpush1.msra.mxu0 0.0
    %281 = vmatprep.subr.mxu0 0.0
    %282 = vmatpush1.msra.mxu0 0.0
    %283 = vmatprep.subr.mxu0 0.0
    %284 = vmatpush1.msra.mxu0 0.0
    %285 = vmatprep.mubr.f32.mxu0 0.0
    %v286 = vand.u32 %v65, 4294901760
    %v287 = vsub.f32 %v65, %v286
    %288 = vmatmul.mubr.f32.gmra.mrb[0].mxu0 %v287
    %v289 = vpop.f32.mrb[0].mxu0
    %v290 = vadd.f32 %v216, %v289
    %v291 = vpop.f32.mrb[0].mxu0
    %292 = vdwg.mxu0
    %293 = vmatprep.subr.mxu0 0.0
    %v294 = vand.u32 %v55, 4294901760
    %295 = vmatpush1.msra.mxu0 %v294
    %296 = vmatprep.subr.mxu0 0.0
    %297 = vmatpush1.msra.mxu0 0.0
    %298 = vmatprep.subr.mxu0 0.0
    %299 = vmatpush1.msra.mxu0 0.0
    %300 = vmatprep.subr.mxu0 0.0
    %301 = vmatpush1.msra.mxu0 0.0
    %302 = vmatprep.subr.mxu0 0.0
    %303 = vmatpush1.msra.mxu0 0.0
    %304 = vmatprep.subr.mxu0 0.0
    %305 = vmatpush1.msra.mxu0 0.0
    %306 = vmatprep.subr.mxu0 0.0
    %307 = vmatpush1.msra.mxu0 0.0
    %308 = vmatprep.subr.mxu0 0.0
    %309 = vmatpush1.msra.mxu0 0.0
    %310 = vmatprep.subr.mxu0 0.0
    %311 = vmatpush1.msra.mxu0 0.0
    %312 = vmatprep.subr.mxu0 0.0
    %313 = vmatpush1.msra.mxu0 0.0
    %314 = vmatprep.subr.mxu0 0.0
    %315 = vmatpush1.msra.mxu0 0.0
    %316 = vmatprep.subr.mxu0 0.0
    %317 = vmatpush1.msra.mxu0 0.0
    %318 = vmatprep.subr.mxu0 0.0
    %319 = vmatpush1.msra.mxu0 0.0
    %320 = vmatprep.subr.mxu0 0.0
    %321 = vmatpush1.msra.mxu0 0.0
    %322 = vmatprep.subr.mxu0 0.0
    %323 = vmatpush1.msra.mxu0 0.0
    %324 = vmatprep.subr.mxu0 0.0
    %325 = vmatpush1.msra.mxu0 0.0
    %326 = vmatprep.subr.mxu0 0.0
    %327 = vmatpush1.msra.mxu0 0.0
    %328 = vmatprep.subr.mxu0 0.0
    %329 = vmatpush1.msra.mxu0 0.0
    %330 = vmatprep.subr.mxu0 0.0
    %331 = vmatpush1.msra.mxu0 0.0
    %332 = vmatprep.subr.mxu0 0.0
    %333 = vmatpush1.msra.mxu0 0.0
    %334 = vmatprep.subr.mxu0 0.0
    %335 = vmatpush1.msra.mxu0 0.0
    %336 = vmatprep.subr.mxu0 0.0
    %337 = vmatpush1.msra.mxu0 0.0
    %338 = vmatprep.subr.mxu0 0.0
    %339 = vmatpush1.msra.mxu0 0.0
    %340 = vmatprep.subr.mxu0 0.0
    %341 = vmatpush1.msra.mxu0 0.0
    %342 = vmatprep.subr.mxu0 0.0
    %343 = vmatpush1.msra.mxu0 0.0
    %344 = vmatprep.subr.mxu0 0.0
    %345 = vmatpush1.msra.mxu0 0.0
    %346 = vmatprep.subr.mxu0 0.0
    %347 = vmatpush1.msra.mxu0 0.0
    %348 = vmatprep.subr.mxu0 0.0
    %349 = vmatpush1.msra.mxu0 0.0
    %350 = vmatprep.subr.mxu0 0.0
    %351 = vmatpush1.msra.mxu0 0.0
    %352 = vmatprep.subr.mxu0 0.0
    %353 = vmatpush1.msra.mxu0 0.0
    %354 = vmatprep.subr.mxu0 0.0
    %355 = vmatpush1.msra.mxu0 0.0
    %356 = vmatprep.subr.mxu0 0.0
    %357 = vmatpush1.msra.mxu0 0.0
    %358 = vmatprep.mubr.f32.mxu0 0.0
    %v359 = vand.u32 %v65, 4294901760
    %v360 = vsub.f32 %v65, %v359
    %v361 = vand.u32 %v360, 4294901760
    %362 = vmatmul.mubr.f32.gmra.mrb[0].mxu0 %v361
    %v363 = vpop.f32.mrb[0].mxu0
    %v364 = vadd.f32 %v290, %v363
    %v365 = vpop.f32.mrb[0].mxu0
    %366 = vdwg.mxu0
    %367 = vmatprep.subr.mxu0 0.0
    %v368 = vand.u32 %v55, 4294901760
    %v369 = vsub.f32 %v55, %v368
    %v370 = vand.u32 %v369, 4294901760
    %371 = vmatpush1.msra.mxu0 %v370
    %372 = vmatprep.subr.mxu0 0.0
    %373 = vmatpush1.msra.mxu0 0.0
    %374 = vmatprep.subr.mxu0 0.0
    %375 = vmatpush1.msra.mxu0 0.0
    %376 = vmatprep.subr.mxu0 0.0
    %377 = vmatpush1.msra.mxu0 0.0
    %378 = vmatprep.subr.mxu0 0.0
    %379 = vmatpush1.msra.mxu0 0.0
    %380 = vmatprep.subr.mxu0 0.0
    %381 = vmatpush1.msra.mxu0 0.0
    %382 = vmatprep.subr.mxu0 0.0
    %383 = vmatpush1.msra.mxu0 0.0
    %384 = vmatprep.subr.mxu0 0.0
    %385 = vmatpush1.msra.mxu0 0.0
    %386 = vmatprep.subr.mxu0 0.0
    %387 = vmatpush1.msra.mxu0 0.0
    %388 = vmatprep.subr.mxu0 0.0
    %389 = vmatpush1.msra.mxu0 0.0
    %390 = vmatprep.subr.mxu0 0.0
    %391 = vmatpush1.msra.mxu0 0.0
    %392 = vmatprep.subr.mxu0 0.0
    %393 = vmatpush1.msra.mxu0 0.0
    %394 = vmatprep.subr.mxu0 0.0
    %395 = vmatpush1.msra.mxu0 0.0
    %396 = vmatprep.subr.mxu0 0.0
    %397 = vmatpush1.msra.mxu0 0.0
    %398 = vmatprep.subr.mxu0 0.0
    %399 = vmatpush1.msra.mxu0 0.0
    %400 = vmatprep.subr.mxu0 0.0
    %401 = vmatpush1.msra.mxu0 0.0
    %402 = vmatprep.subr.mxu0 0.0
    %403 = vmatpush1.msra.mxu0 0.0
    %404 = vmatprep.subr.mxu0 0.0
    %405 = vmatpush1.msra.mxu0 0.0
    %406 = vmatprep.subr.mxu0 0.0
    %407 = vmatpush1.msra.mxu0 0.0
    %408 = vmatprep.subr.mxu0 0.0
    %409 = vmatpush1.msra.mxu0 0.0
    %410 = vmatprep.subr.mxu0 0.0
    %411 = vmatpush1.msra.mxu0 0.0
    %412 = vmatprep.subr.mxu0 0.0
    %413 = vmatpush1.msra.mxu0 0.0
    %414 = vmatprep.subr.mxu0 0.0
    %415 = vmatpush1.msra.mxu0 0.0
    %416 = vmatprep.subr.mxu0 0.0
    %417 = vmatpush1.msra.mxu0 0.0
    %418 = vmatprep.subr.mxu0 0.0
    %419 = vmatpush1.msra.mxu0 0.0
    %420 = vmatprep.subr.mxu0 0.0
    %421 = vmatpush1.msra.mxu0 0.0
    %422 = vmatprep.subr.mxu0 0.0
    %423 = vmatpush1.msra.mxu0 0.0
    %424 = vmatprep.subr.mxu0 0.0
    %425 = vmatpush1.msra.mxu0 0.0
    %426 = vmatprep.subr.mxu0 0.0
    %427 = vmatpush1.msra.mxu0 0.0
    %428 = vmatprep.subr.mxu0 0.0
    %429 = vmatpush1.msra.mxu0 0.0
    %430 = vmatprep.subr.mxu0 0.0
    %431 = vmatpush1.msra.mxu0 0.0
    %432 = vmatprep.subr.mxu0 0.0
    %433 = vmatpush1.msra.mxu0 0.0
    %434 = vmatprep.mubr.f32.mxu0 0.0
    %v435 = vand.u32 %v65, 4294901760
    %436 = vmatmul.mubr.f32.gmra.mrb[0].mxu0 %v435
    %v437 = vpop.f32.mrb[0].mxu0
    %v438 = vadd.f32 %v364, %v437
    %v439 = vpop.f32.mrb[0].mxu0
    %440 = vdwg.mxu0
    %441 = vmatprep.subr.mxu0 0.0
    %v442 = vand.u32 %v55, 4294901760
    %443 = vmatpush1.msra.mxu0 %v442
    %444 = vmatprep.subr.mxu0 0.0
    %445 = vmatpush1.msra.mxu0 0.0
    %446 = vmatprep.subr.mxu0 0.0
    %447 = vmatpush1.msra.mxu0 0.0
    %448 = vmatprep.subr.mxu0 0.0
    %449 = vmatpush1.msra.mxu0 0.0
    %450 = vmatprep.subr.mxu0 0.0
    %451 = vmatpush1.msra.mxu0 0.0
    %452 = vmatprep.subr.mxu0 0.0
    %453 = vmatpush1.msra.mxu0 0.0
    %454 = vmatprep.subr.mxu0 0.0
    %455 = vmatpush1.msra.mxu0 0.0
    %456 = vmatprep.subr.mxu0 0.0
    %457 = vmatpush1.msra.mxu0 0.0
    %458 = vmatprep.subr.mxu0 0.0
    %459 = vmatpush1.msra.mxu0 0.0
    %460 = vmatprep.subr.mxu0 0.0
    %461 = vmatpush1.msra.mxu0 0.0
    %462 = vmatprep.subr.mxu0 0.0
    %463 = vmatpush1.msra.mxu0 0.0
    %464 = vmatprep.subr.mxu0 0.0
    %465 = vmatpush1.msra.mxu0 0.0
    %466 = vmatprep.subr.mxu0 0.0
    %467 = vmatpush1.msra.mxu0 0.0
    %468 = vmatprep.subr.mxu0 0.0
    %469 = vmatpush1.msra.mxu0 0.0
    %470 = vmatprep.subr.mxu0 0.0
    %471 = vmatpush1.msra.mxu0 0.0
    %472 = vmatprep.subr.mxu0 0.0
    %473 = vmatpush1.msra.mxu0 0.0
    %474 = vmatprep.subr.mxu0 0.0
    %475 = vmatpush1.msra.mxu0 0.0
    %476 = vmatprep.subr.mxu0 0.0
    %477 = vmatpush1.msra.mxu0 0.0
    %478 = vmatprep.subr.mxu0 0.0
    %479 = vmatpush1.msra.mxu0 0.0
    %480 = vmatprep.subr.mxu0 0.0
    %481 = vmatpush1.msra.mxu0 0.0
    %482 = vmatprep.subr.mxu0 0.0
    %483 = vmatpush1.msra.mxu0 0.0
    %484 = vmatprep.subr.mxu0 0.0
    %485 = vmatpush1.msra.mxu0 0.0
    %486 = vmatprep.subr.mxu0 0.0
    %487 = vmatpush1.msra.mxu0 0.0
    %488 = vmatprep.subr.mxu0 0.0
    %489 = vmatpush1.msra.mxu0 0.0
    %490 = vmatprep.subr.mxu0 0.0
    %491 = vmatpush1.msra.mxu0 0.0
    %492 = vmatprep.subr.mxu0 0.0
    %493 = vmatpush1.msra.mxu0 0.0
    %494 = vmatprep.subr.mxu0 0.0
    %495 = vmatpush1.msra.mxu0 0.0
    %496 = vmatprep.subr.mxu0 0.0
    %497 = vmatpush1.msra.mxu0 0.0
    %498 = vmatprep.subr.mxu0 0.0
    %499 = vmatpush1.msra.mxu0 0.0
    %500 = vmatprep.subr.mxu0 0.0
    %501 = vmatpush1.msra.mxu0 0.0
    %502 = vmatprep.subr.mxu0 0.0
    %503 = vmatpush1.msra.mxu0 0.0
    %504 = vmatprep.subr.mxu0 0.0
    %505 = vmatpush1.msra.mxu0 0.0
    %506 = vmatprep.mubr.f32.mxu0 0.0
    %v507 = vand.u32 %v65, 4294901760
    %508 = vmatmul.mubr.f32.gmra.mrb[0].mxu0 %v507
    %v509 = vpop.f32.mrb[0].mxu0
    %v510 = vadd.f32 %v438, %v509
    %v511 = vpop.f32.mrb[0].mxu0
    %512 = vdwg.mxu0
    %v513 = vmax.f32 %v510, 0.0
    %v514 = vld [vmem:[#allocation2] sm:$0xff]
    %v515 = vld [vmem:[#allocation2 + $0x8] sm:$0xff]
    %v516 = vld [vmem:[#allocation2 + $0x10] sm:$0xff]
    %v517 = vld [vmem:[#allocation2 + $0x18] sm:$0xff]
    %v518 = vld [vmem:[#allocation2 + $0x20] sm:$0xff]
    %v519 = vld [vmem:[#allocation2 + $0x28] sm:$0xff]
    %v520 = vld [vmem:[#allocation2 + $0x30] sm:$0xff]
    %v521 = vld [vmem:[#allocation2 + $0x38] sm:$0xff]
    %v522 = vld [vmem:[#allocation2 + $0x40] sm:$0xff]
    %v523 = vld [vmem:[#allocation2 + $0x48] sm:$0xff]
    %v524 = vld [vmem:[#allocation2 + $0x50] sm:$0xff]
    %v525 = vld [vmem:[#allocation2 + $0x58] sm:$0xff]
    %v526 = vld [vmem:[#allocation2 + $0x60] sm:$0xff]
    %v527 = vld [vmem:[#allocation2 + $0x68] sm:$0xff]
    %v528 = vld [vmem:[#allocation2 + $0x70] sm:$0xff]
    %v529 = vld [vmem:[#allocation2 + $0x78] sm:$0xff]
    %v530 = vld [vmem:[%s4] sm:$0x1]
    %v532 = vlaneseq
    %v533 = vshrl.u32 %v532, 7
    %v534 = vsub.s32 0, %v533
    %v535 = vrot.slane %v530, %v534
    %537 = vmatprep.subr.mxu0 0.0
    %v538 = vand.u32 %v514, 4294901760
    %539 = vmatpush1.msra.mxu0 %v538
    %540 = vmatprep.subr.mxu0 0.0
    %v541 = vand.u32 %v515, 4294901760
    %542 = vmatpush1.msra.mxu0 %v541
    %543 = vmatprep.subr.mxu0 0.0
    %v544 = vand.u32 %v516, 4294901760
    %545 = vmatpush1.msra.mxu0 %v544
    %546 = vmatprep.subr.mxu0 0.0
    %v547 = vand.u32 %v517, 4294901760
    %548 = vmatpush1.msra.mxu0 %v547
    %549 = vmatprep.subr.mxu0 0.0
    %v550 = vand.u32 %v518, 4294901760
    %551 = vmatpush1.msra.mxu0 %v550
    %552 = vmatprep.subr.mxu0 0.0
    %v553 = vand.u32 %v519, 4294901760
    %554 = vmatpush1.msra.mxu0 %v553
    %555 = vmatprep.subr.mxu0 0.0
    %v556 = vand.u32 %v520, 4294901760
    %557 = vmatpush1.msra.mxu0 %v556
    %558 = vmatprep.subr.mxu0 0.0
    %v559 = vand.u32 %v521, 4294901760
    %560 = vmatpush1.msra.mxu0 %v559
    %561 = vmatprep.subr.mxu0 0.0
    %v562 = vand.u32 %v522, 4294901760
    %563 = vmatpush1.msra.mxu0 %v562
    %564 = vmatprep.subr.mxu0 0.0
    %v565 = vand.u32 %v523, 4294901760
    %566 = vmatpush1.msra.mxu0 %v565
    %567 = vmatprep.subr.mxu0 0.0
    %v568 = vand.u32 %v524, 4294901760
    %569 = vmatpush1.msra.mxu0 %v568
    %570 = vmatprep.subr.mxu0 0.0
    %v571 = vand.u32 %v525, 4294901760
    %572 = vmatpush1.msra.mxu0 %v571
    %573 = vmatprep.subr.mxu0 0.0
    %v574 = vand.u32 %v526, 4294901760
    %575 = vmatpush1.msra.mxu0 %v574
    %576 = vmatprep.subr.mxu0 0.0
    %v577 = vand.u32 %v527, 4294901760
    %578 = vmatpush1.msra.mxu0 %v577
    %579 = vmatprep.subr.mxu0 0.0
    %v580 = vand.u32 %v528, 4294901760
    %581 = vmatpush1.msra.mxu0 %v580
    %582 = vmatprep.subr.mxu0 0.0
    %v583 = vand.u32 %v529, 4294901760
    %584 = vmatpush1.msra.mxu0 %v583
    %585 = vmatprep.subr.mxu0 0.0
    %586 = vmatpush1.msra.mxu0 0.0
    %587 = vmatprep.subr.mxu0 0.0
    %588 = vmatpush1.msra.mxu0 0.0
    %589 = vmatprep.subr.mxu0 0.0
    %590 = vmatpush1.msra.mxu0 0.0
    %591 = vmatprep.subr.mxu0 0.0
    %592 = vmatpush1.msra.mxu0 0.0
    %593 = vmatprep.subr.mxu0 0.0
    %594 = vmatpush1.msra.mxu0 0.0
    %595 = vmatprep.subr.mxu0 0.0
    %596 = vmatpush1.msra.mxu0 0.0
    %597 = vmatprep.subr.mxu0 0.0
    %598 = vmatpush1.msra.mxu0 0.0
    %599 = vmatprep.subr.mxu0 0.0
    %600 = vmatpush1.msra.mxu0 0.0
    %601 = vmatprep.subr.mxu0 0.0
    %602 = vmatpush1.msra.mxu0 0.0
    %603 = vmatprep.subr.mxu0 0.0
    %604 = vmatpush1.msra.mxu0 0.0
    %605 = vmatprep.subr.mxu0 0.0
    %606 = vmatpush1.msra.mxu0 0.0
    %607 = vmatprep.subr.mxu0 0.0
    %608 = vmatpush1.msra.mxu0 0.0
    %609 = vmatprep.subr.mxu0 0.0
    %610 = vmatpush1.msra.mxu0 0.0
    %611 = vmatprep.subr.mxu0 0.0
    %612 = vmatpush1.msra.mxu0 0.0
    %613 = vmatprep.subr.mxu0 0.0
    %614 = vmatpush1.msra.mxu0 0.0
    %615 = vmatprep.subr.mxu0 0.0
    %616 = vmatpush1.msra.mxu0 0.0
    %617 = vmatprep.mubr.f32.mxu0 0.0
    %v618 = vand.u32 %v513, 4294901760
    %v619 = vsub.f32 %v513, %v618
    %v620 = vand.u32 %v619, 4294901760
    %v621 = vsub.f32 %v619, %v620
    %v622 = vand.u32 %v621, 4294901760
    %623 = vmatmul.mubr.f32.gmra.mrb[0].mxu0 %v622
    %v624 = vpop.f32.mrb[0].mxu0
    %v625 = vadd.f32 %v535, %v624
    %v626 = vpop.f32.mrb[0].mxu0
    %627 = vdwg.mxu0
    %628 = vmatprep.subr.mxu0 0.0
    %v629 = vand.u32 %v514, 4294901760
    %v630 = vsub.f32 %v514, %v629
    %v631 = vand.u32 %v630, 4294901760
    %v632 = vsub.f32 %v630, %v631
    %v633 = vand.u32 %v632, 4294901760
    %634 = vmatpush1.msra.mxu0 %v633
    %635 = vmatprep.subr.mxu0 0.0
    %v636 = vand.u32 %v515, 4294901760
    %v637 = vsub.f32 %v515, %v636
    %v638 = vand.u32 %v637, 4294901760
    %v639 = vsub.f32 %v637, %v638
    %v640 = vand.u32 %v639, 4294901760
    %641 = vmatpush1.msra.mxu0 %v640
    %642 = vmatprep.subr.mxu0 0.0
    %v643 = vand.u32 %v516, 4294901760
    %v644 = vsub.f32 %v516, %v643
    %v645 = vand.u32 %v644, 4294901760
    %v646 = vsub.f32 %v644, %v645
    %v647 = vand.u32 %v646, 4294901760
    %648 = vmatpush1.msra.mxu0 %v647
    %649 = vmatprep.subr.mxu0 0.0
    %v650 = vand.u32 %v517, 4294901760
    %v651 = vsub.f32 %v517, %v650
    %v652 = vand.u32 %v651, 4294901760
    %v653 = vsub.f32 %v651, %v652
    %v654 = vand.u32 %v653, 4294901760
    %655 = vmatpush1.msra.mxu0 %v654
    %656 = vmatprep.subr.mxu0 0.0
    %v657 = vand.u32 %v518, 4294901760
    %v658 = vsub.f32 %v518, %v657
    %v659 = vand.u32 %v658, 4294901760
    %v660 = vsub.f32 %v658, %v659
    %v661 = vand.u32 %v660, 4294901760
    %662 = vmatpush1.msra.mxu0 %v661
    %663 = vmatprep.subr.mxu0 0.0
    %v664 = vand.u32 %v519, 4294901760
    %v665 = vsub.f32 %v519, %v664
    %v666 = vand.u32 %v665, 4294901760
    %v667 = vsub.f32 %v665, %v666
    %v668 = vand.u32 %v667, 4294901760
    %669 = vmatpush1.msra.mxu0 %v668
    %670 = vmatprep.subr.mxu0 0.0
    %v671 = vand.u32 %v520, 4294901760
    %v672 = vsub.f32 %v520, %v671
    %v673 = vand.u32 %v672, 4294901760
    %v674 = vsub.f32 %v672, %v673
    %v675 = vand.u32 %v674, 4294901760
    %676 = vmatpush1.msra.mxu0 %v675
    %677 = vmatprep.subr.mxu0 0.0
    %v678 = vand.u32 %v521, 4294901760
    %v679 = vsub.f32 %v521, %v678
    %v680 = vand.u32 %v679, 4294901760
    %v681 = vsub.f32 %v679, %v680
    %v682 = vand.u32 %v681, 4294901760
    %683 = vmatpush1.msra.mxu0 %v682
    %684 = vmatprep.subr.mxu0 0.0
    %v685 = vand.u32 %v522, 4294901760
    %v686 = vsub.f32 %v522, %v685
    %v687 = vand.u32 %v686, 4294901760
    %v688 = vsub.f32 %v686, %v687
    %v689 = vand.u32 %v688, 4294901760
    %690 = vmatpush1.msra.mxu0 %v689
    %691 = vmatprep.subr.mxu0 0.0
    %v692 = vand.u32 %v523, 4294901760
    %v693 = vsub.f32 %v523, %v692
    %v694 = vand.u32 %v693, 4294901760
    %v695 = vsub.f32 %v693, %v694
    %v696 = vand.u32 %v695, 4294901760
    %697 = vmatpush1.msra.mxu0 %v696
    %698 = vmatprep.subr.mxu0 0.0
    %v699 = vand.u32 %v524, 4294901760
    %v700 = vsub.f32 %v524, %v699
    %v701 = vand.u32 %v700, 4294901760
    %v702 = vsub.f32 %v700, %v701
    %v703 = vand.u32 %v702, 4294901760
    %704 = vmatpush1.msra.mxu0 %v703
    %705 = vmatprep.subr.mxu0 0.0
    %v706 = vand.u32 %v525, 4294901760
    %v707 = vsub.f32 %v525, %v706
    %v708 = vand.u32 %v707, 4294901760
    %v709 = vsub.f32 %v707, %v708
    %v710 = vand.u32 %v709, 4294901760
    %711 = vmatpush1.msra.mxu0 %v710
    %712 = vmatprep.subr.mxu0 0.0
    %v713 = vand.u32 %v526, 4294901760
    %v714 = vsub.f32 %v526, %v713
    %v715 = vand.u32 %v714, 4294901760
    %v716 = vsub.f32 %v714, %v715
    %v717 = vand.u32 %v716, 4294901760
    %718 = vmatpush1.msra.mxu0 %v717
    %719 = vmatprep.subr.mxu0 0.0
    %v720 = vand.u32 %v527, 4294901760
    %v721 = vsub.f32 %v527, %v720
    %v722 = vand.u32 %v721, 4294901760
    %v723 = vsub.f32 %v721, %v722
    %v724 = vand.u32 %v723, 4294901760
    %725 = vmatpush1.msra.mxu0 %v724
    %726 = vmatprep.subr.mxu0 0.0
    %v727 = vand.u32 %v528, 4294901760
    %v728 = vsub.f32 %v528, %v727
    %v729 = vand.u32 %v728, 4294901760
    %v730 = vsub.f32 %v728, %v729
    %v731 = vand.u32 %v730, 4294901760
    %732 = vmatpush1.msra.mxu0 %v731
    %733 = vmatprep.subr.mxu0 0.0
    %v734 = vand.u32 %v529, 4294901760
    %v735 = vsub.f32 %v529, %v734
    %v736 = vand.u32 %v735, 4294901760
    %v737 = vsub.f32 %v735, %v736
    %v738 = vand.u32 %v737, 4294901760
    %739 = vmatpush1.msra.mxu0 %v738
    %740 = vmatprep.subr.mxu0 0.0
    %741 = vmatpush1.msra.mxu0 0.0
    %742 = vmatprep.subr.mxu0 0.0
    %743 = vmatpush1.msra.mxu0 0.0
    %744 = vmatprep.subr.mxu0 0.0
    %745 = vmatpush1.msra.mxu0 0.0
    %746 = vmatprep.subr.mxu0 0.0
    %747 = vmatpush1.msra.mxu0 0.0
    %748 = vmatprep.subr.mxu0 0.0
    %749 = vmatpush1.msra.mxu0 0.0
    %750 = vmatprep.subr.mxu0 0.0
    %751 = vmatpush1.msra.mxu0 0.0
    %752 = vmatprep.subr.mxu0 0.0
    %753 = vmatpush1.msra.mxu0 0.0
    %754 = vmatprep.subr.mxu0 0.0
    %755 = vmatpush1.msra.mxu0 0.0
    %756 = vmatprep.subr.mxu0 0.0
    %757 = vmatpush1.msra.mxu0 0.0
    %758 = vmatprep.subr.mxu0 0.0
    %759 = vmatpush1.msra.mxu0 0.0
    %760 = vmatprep.subr.mxu0 0.0
    %761 = vmatpush1.msra.mxu0 0.0
    %762 = vmatprep.subr.mxu0 0.0
    %763 = vmatpush1.msra.mxu0 0.0
    %764 = vmatprep.subr.mxu0 0.0
    %765 = vmatpush1.msra.mxu0 0.0
    %766 = vmatprep.subr.mxu0 0.0
    %767 = vmatpush1.msra.mxu0 0.0
    %768 = vmatprep.subr.mxu0 0.0
    %769 = vmatpush1.msra.mxu0 0.0
    %770 = vmatprep.subr.mxu0 0.0
    %771 = vmatpush1.msra.mxu0 0.0
    %772 = vmatprep.mubr.f32.mxu0 0.0
    %v773 = vand.u32 %v513, 4294901760
    %774 = vmatmul.mubr.f32.gmra.mrb[0].mxu0 %v773
    %v775 = vpop.f32.mrb[0].mxu0
    %v776 = vadd.f32 %v625, %v775
    %v777 = vpop.f32.mrb[0].mxu0
    %778 = vdwg.mxu0
    %779 = vmatprep.subr.mxu0 0.0
    %v780 = vand.u32 %v514, 4294901760
    %v781 = vsub.f32 %v514, %v780
    %782 = vmatpush1.msra.mxu0 %v781
    %783 = vmatprep.subr.mxu0 0.0
    %v784 = vand.u32 %v515, 4294901760
    %v785 = vsub.f32 %v515, %v784
    %786 = vmatpush1.msra.mxu0 %v785
    %787 = vmatprep.subr.mxu0 0.0
    %v788 = vand.u32 %v516, 4294901760
    %v789 = vsub.f32 %v516, %v788
    %790 = vmatpush1.msra.mxu0 %v789
    %791 = vmatprep.subr.mxu0 0.0
    %v792 = vand.u32 %v517, 4294901760
    %v793 = vsub.f32 %v517, %v792
    %794 = vmatpush1.msra.mxu0 %v793
    %795 = vmatprep.subr.mxu0 0.0
    %v796 = vand.u32 %v518, 4294901760
    %v797 = vsub.f32 %v518, %v796
    %798 = vmatpush1.msra.mxu0 %v797
    %799 = vmatprep.subr.mxu0 0.0
    %v800 = vand.u32 %v519, 4294901760
    %v801 = vsub.f32 %v519, %v800
    %802 = vmatpush1.msra.mxu0 %v801
    %803 = vmatprep.subr.mxu0 0.0
    %v804 = vand.u32 %v520, 4294901760
    %v805 = vsub.f32 %v520, %v804
    %806 = vmatpush1.msra.mxu0 %v805
    %807 = vmatprep.subr.mxu0 0.0
    %v808 = vand.u32 %v521, 4294901760
    %v809 = vsub.f32 %v521, %v808
    %810 = vmatpush1.msra.mxu0 %v809
    %811 = vmatprep.subr.mxu0 0.0
    %v812 = vand.u32 %v522, 4294901760
    %v813 = vsub.f32 %v522, %v812
    %814 = vmatpush1.msra.mxu0 %v813
    %815 = vmatprep.subr.mxu0 0.0
    %v816 = vand.u32 %v523, 4294901760
    %v817 = vsub.f32 %v523, %v816
    %818 = vmatpush1.msra.mxu0 %v817
    %819 = vmatprep.subr.mxu0 0.0
    %v820 = vand.u32 %v524, 4294901760
    %v821 = vsub.f32 %v524, %v820
    %822 = vmatpush1.msra.mxu0 %v821
    %823 = vmatprep.subr.mxu0 0.0
    %v824 = vand.u32 %v525, 4294901760
    %v825 = vsub.f32 %v525, %v824
    %826 = vmatpush1.msra.mxu0 %v825
    %827 = vmatprep.subr.mxu0 0.0
    %v828 = vand.u32 %v526, 4294901760
    %v829 = vsub.f32 %v526, %v828
    %830 = vmatpush1.msra.mxu0 %v829
    %831 = vmatprep.subr.mxu0 0.0
    %v832 = vand.u32 %v527, 4294901760
    %v833 = vsub.f32 %v527, %v832
    %834 = vmatpush1.msra.mxu0 %v833
    %835 = vmatprep.subr.mxu0 0.0
    %v836 = vand.u32 %v528, 4294901760
    %v837 = vsub.f32 %v528, %v836
    %838 = vmatpush1.msra.mxu0 %v837
    %839 = vmatprep.subr.mxu0 0.0
    %v840 = vand.u32 %v529, 4294901760
    %v841 = vsub.f32 %v529, %v840
    %842 = vmatpush1.msra.mxu0 %v841
    %843 = vmatprep.subr.mxu0 0.0
    %844 = vmatpush1.msra.mxu0 0.0
    %845 = vmatprep.subr.mxu0 0.0
    %846 = vmatpush1.msra.mxu0 0.0
    %847 = vmatprep.subr.mxu0 0.0
    %848 = vmatpush1.msra.mxu0 0.0
    %849 = vmatprep.subr.mxu0 0.0
    %850 = vmatpush1.msra.mxu0 0.0
    %851 = vmatprep.subr.mxu0 0.0
    %852 = vmatpush1.msra.mxu0 0.0
    %853 = vmatprep.subr.mxu0 0.0
    %854 = vmatpush1.msra.mxu0 0.0
    %855 = vmatprep.subr.mxu0 0.0
    %856 = vmatpush1.msra.mxu0 0.0
    %857 = vmatprep.subr.mxu0 0.0
    %858 = vmatpush1.msra.mxu0 0.0
    %859 = vmatprep.subr.mxu0 0.0
    %860 = vmatpush1.msra.mxu0 0.0
    %861 = vmatprep.subr.mxu0 0.0
    %862 = vmatpush1.msra.mxu0 0.0
    %863 = vmatprep.subr.mxu0 0.0
    %864 = vmatpush1.msra.mxu0 0.0
    %865 = vmatprep.subr.mxu0 0.0
    %866 = vmatpush1.msra.mxu0 0.0
    %867 = vmatprep.subr.mxu0 0.0
    %868 = vmatpush1.msra.mxu0 0.0
    %869 = vmatprep.subr.mxu0 0.0
    %870 = vmatpush1.msra.mxu0 0.0
    %871 = vmatprep.subr.mxu0 0.0
    %872 = vmatpush1.msra.mxu0 0.0
    %873 = vmatprep.subr.mxu0 0.0
    %874 = vmatpush1.msra.mxu0 0.0
    %875 = vmatprep.mubr.f32.mxu0 0.0
    %v876 = vand.u32 %v513, 4294901760
    %v877 = vsub.f32 %v513, %v876
    %878 = vmatmul.mubr.f32.gmra.mrb[0].mxu0 %v877
    %v879 = vpop.f32.mrb[0].mxu0
    %v880 = vadd.f32 %v776, %v879
    %v881 = vpop.f32.mrb[0].mxu0
    %882 = vdwg.mxu0
    %883 = vmatprep.subr.mxu0 0.0
    %v884 = vand.u32 %v514, 4294901760
    %885 = vmatpush1.msra.mxu0 %v884
    %886 = vmatprep.subr.mxu0 0.0
    %v887 = vand.u32 %v515, 4294901760
    %888 = vmatpush1.msra.mxu0 %v887
    %889 = vmatprep.subr.mxu0 0.0
    %v890 = vand.u32 %v516, 4294901760
    %891 = vmatpush1.msra.mxu0 %v890
    %892 = vmatprep.subr.mxu0 0.0
    %v893 = vand.u32 %v517, 4294901760
    %894 = vmatpush1.msra.mxu0 %v893
    %895 = vmatprep.subr.mxu0 0.0
    %v896 = vand.u32 %v518, 4294901760
    %897 = vmatpush1.msra.mxu0 %v896
    %898 = vmatprep.subr.mxu0 0.0
    %v899 = vand.u32 %v519, 4294901760
    %900 = vmatpush1.msra.mxu0 %v899
    %901 = vmatprep.subr.mxu0 0.0
    %v902 = vand.u32 %v520, 4294901760
    %903 = vmatpush1.msra.mxu0 %v902
    %904 = vmatprep.subr.mxu0 0.0
    %v905 = vand.u32 %v521, 4294901760
    %906 = vmatpush1.msra.mxu0 %v905
    %907 = vmatprep.subr.mxu0 0.0
    %v908 = vand.u32 %v522, 4294901760
    %909 = vmatpush1.msra.mxu0 %v908
    %910 = vmatprep.subr.mxu0 0.0
    %v911 = vand.u32 %v523, 4294901760
    %912 = vmatpush1.msra.mxu0 %v911
    %913 = vmatprep.subr.mxu0 0.0
    %v914 = vand.u32 %v524, 4294901760
    %915 = vmatpush1.msra.mxu0 %v914
    %916 = vmatprep.subr.mxu0 0.0
    %v917 = vand.u32 %v525, 4294901760
    %918 = vmatpush1.msra.mxu0 %v917
    %919 = vmatprep.subr.mxu0 0.0
    %v920 = vand.u32 %v526, 4294901760
    %921 = vmatpush1.msra.mxu0 %v920
    %922 = vmatprep.subr.mxu0 0.0
    %v923 = vand.u32 %v527, 4294901760
    %924 = vmatpush1.msra.mxu0 %v923
    %925 = vmatprep.subr.mxu0 0.0
    %v926 = vand.u32 %v528, 4294901760
    %927 = vmatpush1.msra.mxu0 %v926
    %928 = vmatprep.subr.mxu0 0.0
    %v929 = vand.u32 %v529, 4294901760
    %930 = vmatpush1.msra.mxu0 %v929
    %931 = vmatprep.subr.mxu0 0.0
    %932 = vmatpush1.msra.mxu0 0.0
    %933 = vmatprep.subr.mxu0 0.0
    %934 = vmatpush1.msra.mxu0 0.0
    %935 = vmatprep.subr.mxu0 0.0
    %936 = vmatpush1.msra.mxu0 0.0
    %937 = vmatprep.subr.mxu0 0.0
    %938 = vmatpush1.msra.mxu0 0.0
    %939 = vmatprep.subr.mxu0 0.0
    %940 = vmatpush1.msra.mxu0 0.0
    %941 = vmatprep.subr.mxu0 0.0
    %942 = vmatpush1.msra.mxu0 0.0
    %943 = vmatprep.subr.mxu0 0.0
    %944 = vmatpush1.msra.mxu0 0.0
    %945 = vmatprep.subr.mxu0 0.0
    %946 = vmatpush1.msra.mxu0 0.0
    %947 = vmatprep.subr.mxu0 0.0
    %948 = vmatpush1.msra.mxu0 0.0
    %949 = vmatprep.subr.mxu0 0.0
    %950 = vmatpush1.msra.mxu0 0.0
    %951 = vmatprep.subr.mxu0 0.0
    %952 = vmatpush1.msra.mxu0 0.0
    %953 = vmatprep.subr.mxu0 0.0
    %954 = vmatpush1.msra.mxu0 0.0
    %955 = vmatprep.subr.mxu0 0.0
    %956 = vmatpush1.msra.mxu0 0.0
    %957 = vmatprep.subr.mxu0 0.0
    %958 = vmatpush1.msra.mxu0 0.0
    %959 = vmatprep.subr.mxu0 0.0
    %960 = vmatpush1.msra.mxu0 0.0
    %961 = vmatprep.subr.mxu0 0.0
    %962 = vmatpush1.msra.mxu0 0.0
    %963 = vmatprep.mubr.f32.mxu0 0.0
    %v964 = vand.u32 %v513, 4294901760
    %v965 = vsub.f32 %v513, %v964
    %v966 = vand.u32 %v965, 4294901760
    %967 = vmatmul.mubr.f32.gmra.mrb[0].mxu0 %v966
    %v968 = vpop.f32.mrb[0].mxu0
    %v969 = vadd.f32 %v880, %v968
    %v970 = vpop.f32.mrb[0].mxu0
    %971 = vdwg.mxu0
    %972 = vmatprep.subr.mxu0 0.0
    %v973 = vand.u32 %v514, 4294901760
    %v974 = vsub.f32 %v514, %v973
    %v975 = vand.u32 %v974, 4294901760
    %976 = vmatpush1.msra.mxu0 %v975
    %977 = vmatprep.subr.mxu0 0.0
    %v978 = vand.u32 %v515, 4294901760
    %v979 = vsub.f32 %v515, %v978
    %v980 = vand.u32 %v979, 4294901760
    %981 = vmatpush1.msra.mxu0 %v980
    %982 = vmatprep.subr.mxu0 0.0
    %v983 = vand.u32 %v516, 4294901760
    %v984 = vsub.f32 %v516, %v983
    %v985 = vand.u32 %v984, 4294901760
    %986 = vmatpush1.msra.mxu0 %v985
    %987 = vmatprep.subr.mxu0 0.0
    %v988 = vand.u32 %v517, 4294901760
    %v989 = vsub.f32 %v517, %v988
    %v990 = vand.u32 %v989, 4294901760
    %991 = vmatpush1.msra.mxu0 %v990
    %992 = vmatprep.subr.mxu0 0.0
    %v993 = vand.u32 %v518, 4294901760
    %v994 = vsub.f32 %v518, %v993
    %v995 = vand.u32 %v994, 4294901760
    %996 = vmatpush1.msra.mxu0 %v995
    %997 = vmatprep.subr.mxu0 0.0
    %v998 = vand.u32 %v519, 4294901760
    %v999 = vsub.f32 %v519, %v998
    %v1000 = vand.u32 %v999, 4294901760
    %1001 = vmatpush1.msra.mxu0 %v1000
    %1002 = vmatprep.subr.mxu0 0.0
    %v1003 = vand.u32 %v520, 4294901760
    %v1004 = vsub.f32 %v520, %v1003
    %v1005 = vand.u32 %v1004, 4294901760
    %1006 = vmatpush1.msra.mxu0 %v1005
    %1007 = vmatprep.subr.mxu0 0.0
    %v1008 = vand.u32 %v521, 4294901760
    %v1009 = vsub.f32 %v521, %v1008
    %v1010 = vand.u32 %v1009, 4294901760
    %1011 = vmatpush1.msra.mxu0 %v1010
    %1012 = vmatprep.subr.mxu0 0.0
    %v1013 = vand.u32 %v522, 4294901760
    %v1014 = vsub.f32 %v522, %v1013
    %v1015 = vand.u32 %v1014, 4294901760
    %1016 = vmatpush1.msra.mxu0 %v1015
    %1017 = vmatprep.subr.mxu0 0.0
    %v1018 = vand.u32 %v523, 4294901760
    %v1019 = vsub.f32 %v523, %v1018
    %v1020 = vand.u32 %v1019, 4294901760
    %1021 = vmatpush1.msra.mxu0 %v1020
    %1022 = vmatprep.subr.mxu0 0.0
    %v1023 = vand.u32 %v524, 4294901760
    %v1024 = vsub.f32 %v524, %v1023
    %v1025 = vand.u32 %v1024, 4294901760
    %1026 = vmatpush1.msra.mxu0 %v1025
    %1027 = vmatprep.subr.mxu0 0.0
    %v1028 = vand.u32 %v525, 4294901760
    %v1029 = vsub.f32 %v525, %v1028
    %v1030 = vand.u32 %v1029, 4294901760
    %1031 = vmatpush1.msra.mxu0 %v1030
    %1032 = vmatprep.subr.mxu0 0.0
    %v1033 = vand.u32 %v526, 4294901760
    %v1034 = vsub.f32 %v526, %v1033
    %v1035 = vand.u32 %v1034, 4294901760
    %1036 = vmatpush1.msra.mxu0 %v1035
    %1037 = vmatprep.subr.mxu0 0.0
    %v1038 = vand.u32 %v527, 4294901760
    %v1039 = vsub.f32 %v527, %v1038
    %v1040 = vand.u32 %v1039, 4294901760
    %1041 = vmatpush1.msra.mxu0 %v1040
    %1042 = vmatprep.subr.mxu0 0.0
    %v1043 = vand.u32 %v528, 4294901760
    %v1044 = vsub.f32 %v528, %v1043
    %v1045 = vand.u32 %v1044, 4294901760
    %1046 = vmatpush1.msra.mxu0 %v1045
    %1047 = vmatprep.subr.mxu0 0.0
    %v1048 = vand.u32 %v529, 4294901760
    %v1049 = vsub.f32 %v529, %v1048
    %v1050 = vand.u32 %v1049, 4294901760
    %1051 = vmatpush1.msra.mxu0 %v1050
    %1052 = vmatprep.subr.mxu0 0.0
    %1053 = vmatpush1.msra.mxu0 0.0
    %1054 = vmatprep.subr.mxu0 0.0
    %1055 = vmatpush1.msra.mxu0 0.0
    %1056 = vmatprep.subr.mxu0 0.0
    %1057 = vmatpush1.msra.mxu0 0.0
    %1058 = vmatprep.subr.mxu0 0.0
    %1059 = vmatpush1.msra.mxu0 0.0
    %1060 = vmatprep.subr.mxu0 0.0
    %1061 = vmatpush1.msra.mxu0 0.0
    %1062 = vmatprep.subr.mxu0 0.0
    %1063 = vmatpush1.msra.mxu0 0.0
    %1064 = vmatprep.subr.mxu0 0.0
    %1065 = vmatpush1.msra.mxu0 0.0
    %1066 = vmatprep.subr.mxu0 0.0
    %1067 = vmatpush1.msra.mxu0 0.0
    %1068 = vmatprep.subr.mxu0 0.0
    %1069 = vmatpush1.msra.mxu0 0.0
    %1070 = vmatprep.subr.mxu0 0.0
    %1071 = vmatpush1.msra.mxu0 0.0
    %1072 = vmatprep.subr.mxu0 0.0
    %1073 = vmatpush1.msra.mxu0 0.0
    %1074 = vmatprep.subr.mxu0 0.0
    %1075 = vmatpush1.msra.mxu0 0.0
    %1076 = vmatprep.subr.mxu0 0.0
    %1077 = vmatpush1.msra.mxu0 0.0
    %1078 = vmatprep.subr.mxu0 0.0
    %1079 = vmatpush1.msra.mxu0 0.0
    %1080 = vmatprep.subr.mxu0 0.0
    %1081 = vmatpush1.msra.mxu0 0.0
    %1082 = vmatprep.subr.mxu0 0.0
    %1083 = vmatpush1.msra.mxu0 0.0
    %1084 = vmatprep.mubr.f32.mxu0 0.0
    %v1085 = vand.u32 %v513, 4294901760
    %1086 = vmatmul.mubr.f32.gmra.mrb[0].mxu0 %v1085
    %v1087 = vpop.f32.mrb[0].mxu0
    %v1088 = vadd.f32 %v969, %v1087
    %v1089 = vpop.f32.mrb[0].mxu0
    %1090 = vdwg.mxu0
    %1091 = vmatprep.subr.mxu0 0.0
    %v1092 = vand.u32 %v514, 4294901760
    %1093 = vmatpush1.msra.mxu0 %v1092
    %1094 = vmatprep.subr.mxu0 0.0
    %v1095 = vand.u32 %v515, 4294901760
    %1096 = vmatpush1.msra.mxu0 %v1095
    %1097 = vmatprep.subr.mxu0 0.0
    %v1098 = vand.u32 %v516, 4294901760
    %1099 = vmatpush1.msra.mxu0 %v1098
    %1100 = vmatprep.subr.mxu0 0.0
    %v1101 = vand.u32 %v517, 4294901760
    %1102 = vmatpush1.msra.mxu0 %v1101
    %1103 = vmatprep.subr.mxu0 0.0
    %v1104 = vand.u32 %v518, 4294901760
    %1105 = vmatpush1.msra.mxu0 %v1104
    %1106 = vmatprep.subr.mxu0 0.0
    %v1107 = vand.u32 %v519, 4294901760
    %1108 = vmatpush1.msra.mxu0 %v1107
    %1109 = vmatprep.subr.mxu0 0.0
    %v1110 = vand.u32 %v520, 4294901760
    %1111 = vmatpush1.msra.mxu0 %v1110
    %1112 = vmatprep.subr.mxu0 0.0
    %v1113 = vand.u32 %v521, 4294901760
    %1114 = vmatpush1.msra.mxu0 %v1113
    %1115 = vmatprep.subr.mxu0 0.0
    %v1116 = vand.u32 %v522, 4294901760
    %1117 = vmatpush1.msra.mxu0 %v1116
    %1118 = vmatprep.subr.mxu0 0.0
    %v1119 = vand.u32 %v523, 4294901760
    %1120 = vmatpush1.msra.mxu0 %v1119
    %1121 = vmatprep.subr.mxu0 0.0
    %v1122 = vand.u32 %v524, 4294901760
    %1123 = vmatpush1.msra.mxu0 %v1122
    %1124 = vmatprep.subr.mxu0 0.0
    %v1125 = vand.u32 %v525, 4294901760
    %1126 = vmatpush1.msra.mxu0 %v1125
    %1127 = vmatprep.subr.mxu0 0.0
    %v1128 = vand.u32 %v526, 4294901760
    %1129 = vmatpush1.msra.mxu0 %v1128
    %1130 = vmatprep.subr.mxu0 0.0
    %v1131 = vand.u32 %v527, 4294901760
    %1132 = vmatpush1.msra.mxu0 %v1131
    %1133 = vmatprep.subr.mxu0 0.0
    %v1134 = vand.u32 %v528, 4294901760
    %1135 = vmatpush1.msra.mxu0 %v1134
    %1136 = vmatprep.subr.mxu0 0.0
    %v1137 = vand.u32 %v529, 4294901760
    %1138 = vmatpush1.msra.mxu0 %v1137
    %1139 = vmatprep.subr.mxu0 0.0
    %1140 = vmatpush1.msra.mxu0 0.0
    %1141 = vmatprep.subr.mxu0 0.0
    %1142 = vmatpush1.msra.mxu0 0.0
    %1143 = vmatprep.subr.mxu0 0.0
    %1144 = vmatpush1.msra.mxu0 0.0
    %1145 = vmatprep.subr.mxu0 0.0
    %1146 = vmatpush1.msra.mxu0 0.0
    %1147 = vmatprep.subr.mxu0 0.0
    %1148 = vmatpush1.msra.mxu0 0.0
    %1149 = vmatprep.subr.mxu0 0.0
    %1150 = vmatpush1.msra.mxu0 0.0
    %1151 = vmatprep.subr.mxu0 0.0
    %1152 = vmatpush1.msra.mxu0 0.0
    %1153 = vmatprep.subr.mxu0 0.0
    %1154 = vmatpush1.msra.mxu0 0.0
    %1155 = vmatprep.subr.mxu0 0.0
    %1156 = vmatpush1.msra.mxu0 0.0
    %1157 = vmatprep.subr.mxu0 0.0
    %1158 = vmatpush1.msra.mxu0 0.0
    %1159 = vmatprep.subr.mxu0 0.0
    %1160 = vmatpush1.msra.mxu0 0.0
    %1161 = vmatprep.subr.mxu0 0.0
    %1162 = vmatpush1.msra.mxu0 0.0
    %1163 = vmatprep.subr.mxu0 0.0
    %1164 = vmatpush1.msra.mxu0 0.0
    %1165 = vmatprep.subr.mxu0 0.0
    %1166 = vmatpush1.msra.mxu0 0.0
    %1167 = vmatprep.subr.mxu0 0.0
    %1168 = vmatpush1.msra.mxu0 0.0
    %1169 = vmatprep.subr.mxu0 0.0
    %1170 = vmatpush1.msra.mxu0 0.0
    %1171 = vmatprep.mubr.f32.mxu0 0.0
    %v1172 = vand.u32 %v513, 4294901760
    %1173 = vmatmul.mubr.f32.gmra.mrb[0].mxu0 %v1172
    %v1174 = vpop.f32.mrb[0].mxu0
    %v1175 = vadd.f32 %v1088, %v1174
    %v1176 = vpop.f32.mrb[0].mxu0
    %1177 = vdwg.mxu0
    %v1178 = vmax.f32 %v1175, 0.0
    %v1179 = vld [vmem:[#allocation4] sm:$0xff]
    %v1180 = vld [vmem:[#allocation4 + $0x8] sm:$0xff]
    %v1181 = vld [vmem:[#allocation4 + $0x10] sm:$0xff]
    %v1182 = vld [vmem:[#allocation4 + $0x18] sm:$0xff]
    %v1183 = vld [vmem:[#allocation4 + $0x20] sm:$0xff]
    %v1184 = vld [vmem:[#allocation4 + $0x28] sm:$0xff]
    %v1185 = vld [vmem:[#allocation4 + $0x30] sm:$0xff]
    %v1186 = vld [vmem:[#allocation4 + $0x38] sm:$0xff]
    %v1187 = vld [vmem:[#allocation4 + $0x40] sm:$0xff]
    %v1188 = vld [vmem:[#allocation4 + $0x48] sm:$0xff]
    %v1189 = vld [vmem:[#allocation4 + $0x50] sm:$0xff]
    %v1190 = vld [vmem:[#allocation4 + $0x58] sm:$0xff]
    %v1191 = vld [vmem:[#allocation4 + $0x60] sm:$0xff]
    %v1192 = vld [vmem:[#allocation4 + $0x68] sm:$0xff]
    %v1193 = vld [vmem:[#allocation4 + $0x70] sm:$0xff]
    %v1194 = vld [vmem:[#allocation4 + $0x78] sm:$0xff]
    %v1195 = vld [vmem:[%s6] sm:$0x1]
    %v1197 = vlaneseq
    %v1198 = vshrl.u32 %v1197, 7
    %v1199 = vsub.s32 0, %v1198
    %v1200 = vrot.slane %v1195, %v1199
    %1202 = vmatprep.subr.mxu0 0.0
    %v1203 = vand.u32 %v1179, 4294901760
    %1204 = vmatpush1.msra.mxu0 %v1203
    %1205 = vmatprep.subr.mxu0 0.0
    %v1206 = vand.u32 %v1180, 4294901760
    %1207 = vmatpush1.msra.mxu0 %v1206
    %1208 = vmatprep.subr.mxu0 0.0
    %v1209 = vand.u32 %v1181, 4294901760
    %1210 = vmatpush1.msra.mxu0 %v1209
    %1211 = vmatprep.subr.mxu0 0.0
    %v1212 = vand.u32 %v1182, 4294901760
    %1213 = vmatpush1.msra.mxu0 %v1212
    %1214 = vmatprep.subr.mxu0 0.0
    %v1215 = vand.u32 %v1183, 4294901760
    %1216 = vmatpush1.msra.mxu0 %v1215
    %1217 = vmatprep.subr.mxu0 0.0
    %v1218 = vand.u32 %v1184, 4294901760
    %1219 = vmatpush1.msra.mxu0 %v1218
    %1220 = vmatprep.subr.mxu0 0.0
    %v1221 = vand.u32 %v1185, 4294901760
    %1222 = vmatpush1.msra.mxu0 %v1221
    %1223 = vmatprep.subr.mxu0 0.0
    %v1224 = vand.u32 %v1186, 4294901760
    %1225 = vmatpush1.msra.mxu0 %v1224
    %1226 = vmatprep.subr.mxu0 0.0
    %v1227 = vand.u32 %v1187, 4294901760
    %1228 = vmatpush1.msra.mxu0 %v1227
    %1229 = vmatprep.subr.mxu0 0.0
    %v1230 = vand.u32 %v1188, 4294901760
    %1231 = vmatpush1.msra.mxu0 %v1230
    %1232 = vmatprep.subr.mxu0 0.0
    %v1233 = vand.u32 %v1189, 4294901760
    %1234 = vmatpush1.msra.mxu0 %v1233
    %1235 = vmatprep.subr.mxu0 0.0
    %v1236 = vand.u32 %v1190, 4294901760
    %1237 = vmatpush1.msra.mxu0 %v1236
    %1238 = vmatprep.subr.mxu0 0.0
    %v1239 = vand.u32 %v1191, 4294901760
    %1240 = vmatpush1.msra.mxu0 %v1239
    %1241 = vmatprep.subr.mxu0 0.0
    %v1242 = vand.u32 %v1192, 4294901760
    %1243 = vmatpush1.msra.mxu0 %v1242
    %1244 = vmatprep.subr.mxu0 0.0
    %v1245 = vand.u32 %v1193, 4294901760
    %1246 = vmatpush1.msra.mxu0 %v1245
    %1247 = vmatprep.subr.mxu0 0.0
    %v1248 = vand.u32 %v1194, 4294901760
    %1249 = vmatpush1.msra.mxu0 %v1248
    %1250 = vmatprep.subr.mxu0 0.0
    %1251 = vmatpush1.msra.mxu0 0.0
    %1252 = vmatprep.subr.mxu0 0.0
    %1253 = vmatpush1.msra.mxu0 0.0
    %1254 = vmatprep.subr.mxu0 0.0
    %1255 = vmatpush1.msra.mxu0 0.0
    %1256 = vmatprep.subr.mxu0 0.0
    %1257 = vmatpush1.msra.mxu0 0.0
    %1258 = vmatprep.subr.mxu0 0.0
    %1259 = vmatpush1.msra.mxu0 0.0
    %1260 = vmatprep.subr.mxu0 0.0
    %1261 = vmatpush1.msra.mxu0 0.0
    %1262 = vmatprep.subr.mxu0 0.0
    %1263 = vmatpush1.msra.mxu0 0.0
    %1264 = vmatprep.subr.mxu0 0.0
    %1265 = vmatpush1.msra.mxu0 0.0
    %1266 = vmatprep.subr.mxu0 0.0
    %1267 = vmatpush1.msra.mxu0 0.0
    %1268 = vmatprep.subr.mxu0 0.0
    %1269 = vmatpush1.msra.mxu0 0.0
    %1270 = vmatprep.subr.mxu0 0.0
    %1271 = vmatpush1.msra.mxu0 0.0
    %1272 = vmatprep.subr.mxu0 0.0
    %1273 = vmatpush1.msra.mxu0 0.0
    %1274 = vmatprep.subr.mxu0 0.0
    %1275 = vmatpush1.msra.mxu0 0.0
    %1276 = vmatprep.subr.mxu0 0.0
    %1277 = vmatpush1.msra.mxu0 0.0
    %1278 = vmatprep.subr.mxu0 0.0
    %1279 = vmatpush1.msra.mxu0 0.0
    %1280 = vmatprep.subr.mxu0 0.0
    %1281 = vmatpush1.msra.mxu0 0.0
    %1282 = vmatprep.mubr.f32.mxu0 0.0
    %v1283 = vand.u32 %v1178, 4294901760
    %v1284 = vsub.f32 %v1178, %v1283
    %v1285 = vand.u32 %v1284, 4294901760
    %v1286 = vsub.f32 %v1284, %v1285
    %v1287 = vand.u32 %v1286, 4294901760
    %1288 = vmatmul.mubr.f32.gmra.mrb[0].mxu0 %v1287
    %v1289 = vpop.f32.mrb[0].mxu0
    %v1290 = vadd.f32 %v1200, %v1289
    %v1291 = vpop.f32.mrb[0].mxu0
    %1292 = vdwg.mxu0
    %1293 = vmatprep.subr.mxu0 0.0
    %v1294 = vand.u32 %v1179, 4294901760
    %v1295 = vsub.f32 %v1179, %v1294
    %v1296 = vand.u32 %v1295, 4294901760
    %v1297 = vsub.f32 %v1295, %v1296
    %v1298 = vand.u32 %v1297, 4294901760
    %1299 = vmatpush1.msra.mxu0 %v1298
    %1300 = vmatprep.subr.mxu0 0.0
    %v1301 = vand.u32 %v1180, 4294901760
    %v1302 = vsub.f32 %v1180, %v1301
    %v1303 = vand.u32 %v1302, 4294901760
    %v1304 = vsub.f32 %v1302, %v1303
    %v1305 = vand.u32 %v1304, 4294901760
    %1306 = vmatpush1.msra.mxu0 %v1305
    %1307 = vmatprep.subr.mxu0 0.0
    %v1308 = vand.u32 %v1181, 4294901760
    %v1309 = vsub.f32 %v1181, %v1308
    %v1310 = vand.u32 %v1309, 4294901760
    %v1311 = vsub.f32 %v1309, %v1310
    %v1312 = vand.u32 %v1311, 4294901760
    %1313 = vmatpush1.msra.mxu0 %v1312
    %1314 = vmatprep.subr.mxu0 0.0
    %v1315 = vand.u32 %v1182, 4294901760
    %v1316 = vsub.f32 %v1182, %v1315
    %v1317 = vand.u32 %v1316, 4294901760
    %v1318 = vsub.f32 %v1316, %v1317
    %v1319 = vand.u32 %v1318, 4294901760
    %1320 = vmatpush1.msra.mxu0 %v1319
    %1321 = vmatprep.subr.mxu0 0.0
    %v1322 = vand.u32 %v1183, 4294901760
    %v1323 = vsub.f32 %v1183, %v1322
    %v1324 = vand.u32 %v1323, 4294901760
    %v1325 = vsub.f32 %v1323, %v1324
    %v1326 = vand.u32 %v1325, 4294901760
    %1327 = vmatpush1.msra.mxu0 %v1326
    %1328 = vmatprep.subr.mxu0 0.0
    %v1329 = vand.u32 %v1184, 4294901760
    %v1330 = vsub.f32 %v1184, %v1329
    %v1331 = vand.u32 %v1330, 4294901760
    %v1332 = vsub.f32 %v1330, %v1331
    %v1333 = vand.u32 %v1332, 4294901760
    %1334 = vmatpush1.msra.mxu0 %v1333
    %1335 = vmatprep.subr.mxu0 0.0
    %v1336 = vand.u32 %v1185, 4294901760
    %v1337 = vsub.f32 %v1185, %v1336
    %v1338 = vand.u32 %v1337, 4294901760
    %v1339 = vsub.f32 %v1337, %v1338
    %v1340 = vand.u32 %v1339, 4294901760
    %1341 = vmatpush1.msra.mxu0 %v1340
    %1342 = vmatprep.subr.mxu0 0.0
    %v1343 = vand.u32 %v1186, 4294901760
    %v1344 = vsub.f32 %v1186, %v1343
    %v1345 = vand.u32 %v1344, 4294901760
    %v1346 = vsub.f32 %v1344, %v1345
    %v1347 = vand.u32 %v1346, 4294901760
    %1348 = vmatpush1.msra.mxu0 %v1347
    %1349 = vmatprep.subr.mxu0 0.0
    %v1350 = vand.u32 %v1187, 4294901760
    %v1351 = vsub.f32 %v1187, %v1350
    %v1352 = vand.u32 %v1351, 4294901760
    %v1353 = vsub.f32 %v1351, %v1352
    %v1354 = vand.u32 %v1353, 4294901760
    %1355 = vmatpush1.msra.mxu0 %v1354
    %1356 = vmatprep.subr.mxu0 0.0
    %v1357 = vand.u32 %v1188, 4294901760
    %v1358 = vsub.f32 %v1188, %v1357
    %v1359 = vand.u32 %v1358, 4294901760
    %v1360 = vsub.f32 %v1358, %v1359
    %v1361 = vand.u32 %v1360, 4294901760
    %1362 = vmatpush1.msra.mxu0 %v1361
    %1363 = vmatprep.subr.mxu0 0.0
    %v1364 = vand.u32 %v1189, 4294901760
    %v1365 = vsub.f32 %v1189, %v1364
    %v1366 = vand.u32 %v1365, 4294901760
    %v1367 = vsub.f32 %v1365, %v1366
    %v1368 = vand.u32 %v1367, 4294901760
    %1369 = vmatpush1.msra.mxu0 %v1368
    %1370 = vmatprep.subr.mxu0 0.0
    %v1371 = vand.u32 %v1190, 4294901760
    %v1372 = vsub.f32 %v1190, %v1371
    %v1373 = vand.u32 %v1372, 4294901760
    %v1374 = vsub.f32 %v1372, %v1373
    %v1375 = vand.u32 %v1374, 4294901760
    %1376 = vmatpush1.msra.mxu0 %v1375
    %1377 = vmatprep.subr.mxu0 0.0
    %v1378 = vand.u32 %v1191, 4294901760
    %v1379 = vsub.f32 %v1191, %v1378
    %v1380 = vand.u32 %v1379, 4294901760
    %v1381 = vsub.f32 %v1379, %v1380
    %v1382 = vand.u32 %v1381, 4294901760
    %1383 = vmatpush1.msra.mxu0 %v1382
    %1384 = vmatprep.subr.mxu0 0.0
    %v1385 = vand.u32 %v1192, 4294901760
    %v1386 = vsub.f32 %v1192, %v1385
    %v1387 = vand.u32 %v1386, 4294901760
    %v1388 = vsub.f32 %v1386, %v1387
    %v1389 = vand.u32 %v1388, 4294901760
    %1390 = vmatpush1.msra.mxu0 %v1389
    %1391 = vmatprep.subr.mxu0 0.0
    %v1392 = vand.u32 %v1193, 4294901760
    %v1393 = vsub.f32 %v1193, %v1392
    %v1394 = vand.u32 %v1393, 4294901760
    %v1395 = vsub.f32 %v1393, %v1394
    %v1396 = vand.u32 %v1395, 4294901760
    %1397 = vmatpush1.msra.mxu0 %v1396
    %1398 = vmatprep.subr.mxu0 0.0
    %v1399 = vand.u32 %v1194, 4294901760
    %v1400 = vsub.f32 %v1194, %v1399
    %v1401 = vand.u32 %v1400, 4294901760
    %v1402 = vsub.f32 %v1400, %v1401
    %v1403 = vand.u32 %v1402, 4294901760
    %1404 = vmatpush1.msra.mxu0 %v1403
    %1405 = vmatprep.subr.mxu0 0.0
    %1406 = vmatpush1.msra.mxu0 0.0
    %1407 = vmatprep.subr.mxu0 0.0
    %1408 = vmatpush1.msra.mxu0 0.0
    %1409 = vmatprep.subr.mxu0 0.0
    %1410 = vmatpush1.msra.mxu0 0.0
    %1411 = vmatprep.subr.mxu0 0.0
    %1412 = vmatpush1.msra.mxu0 0.0
    %1413 = vmatprep.subr.mxu0 0.0
    %1414 = vmatpush1.msra.mxu0 0.0
    %1415 = vmatprep.subr.mxu0 0.0
    %1416 = vmatpush1.msra.mxu0 0.0
    %1417 = vmatprep.subr.mxu0 0.0
    %1418 = vmatpush1.msra.mxu0 0.0
    %1419 = vmatprep.subr.mxu0 0.0
    %1420 = vmatpush1.msra.mxu0 0.0
    %1421 = vmatprep.subr.mxu0 0.0
    %1422 = vmatpush1.msra.mxu0 0.0
    %1423 = vmatprep.subr.mxu0 0.0
    %1424 = vmatpush1.msra.mxu0 0.0
    %1425 = vmatprep.subr.mxu0 0.0
    %1426 = vmatpush1.msra.mxu0 0.0
    %1427 = vmatprep.subr.mxu0 0.0
    %1428 = vmatpush1.msra.mxu0 0.0
    %1429 = vmatprep.subr.mxu0 0.0
    %1430 = vmatpush1.msra.mxu0 0.0
    %1431 = vmatprep.subr.mxu0 0.0
    %1432 = vmatpush1.msra.mxu0 0.0
    %1433 = vmatprep.subr.mxu0 0.0
    %1434 = vmatpush1.msra.mxu0 0.0
    %1435 = vmatprep.subr.mxu0 0.0
    %1436 = vmatpush1.msra.mxu0 0.0
    %1437 = vmatprep.mubr.f32.mxu0 0.0
    %v1438 = vand.u32 %v1178, 4294901760
    %1439 = vmatmul.mubr.f32.gmra.mrb[0].mxu0 %v1438
    %v1440 = vpop.f32.mrb[0].mxu0
    %v1441 = vadd.f32 %v1290, %v1440
    %v1442 = vpop.f32.mrb[0].mxu0
    %1443 = vdwg.mxu0
    %1444 = vmatprep.subr.mxu0 0.0
    %v1445 = vand.u32 %v1179, 4294901760
    %v1446 = vsub.f32 %v1179, %v1445
    %1447 = vmatpush1.msra.mxu0 %v1446
    %1448 = vmatprep.subr.mxu0 0.0
    %v1449 = vand.u32 %v1180, 4294901760
    %v1450 = vsub.f32 %v1180, %v1449
    %1451 = vmatpush1.msra.mxu0 %v1450
    %1452 = vmatprep.subr.mxu0 0.0
    %v1453 = vand.u32 %v1181, 4294901760
    %v1454 = vsub.f32 %v1181, %v1453
    %1455 = vmatpush1.msra.mxu0 %v1454
    %1456 = vmatprep.subr.mxu0 0.0
    %v1457 = vand.u32 %v1182, 4294901760
    %v1458 = vsub.f32 %v1182, %v1457
    %1459 = vmatpush1.msra.mxu0 %v1458
    %1460 = vmatprep.subr.mxu0 0.0
    %v1461 = vand.u32 %v1183, 4294901760
    %v1462 = vsub.f32 %v1183, %v1461
    %1463 = vmatpush1.msra.mxu0 %v1462
    %1464 = vmatprep.subr.mxu0 0.0
    %v1465 = vand.u32 %v1184, 4294901760
    %v1466 = vsub.f32 %v1184, %v1465
    %1467 = vmatpush1.msra.mxu0 %v1466
    %1468 = vmatprep.subr.mxu0 0.0
    %v1469 = vand.u32 %v1185, 4294901760
    %v1470 = vsub.f32 %v1185, %v1469
    %1471 = vmatpush1.msra.mxu0 %v1470
    %1472 = vmatprep.subr.mxu0 0.0
    %v1473 = vand.u32 %v1186, 4294901760
    %v1474 = vsub.f32 %v1186, %v1473
    %1475 = vmatpush1.msra.mxu0 %v1474
    %1476 = vmatprep.subr.mxu0 0.0
    %v1477 = vand.u32 %v1187, 4294901760
    %v1478 = vsub.f32 %v1187, %v1477
    %1479 = vmatpush1.msra.mxu0 %v1478
    %1480 = vmatprep.subr.mxu0 0.0
    %v1481 = vand.u32 %v1188, 4294901760
    %v1482 = vsub.f32 %v1188, %v1481
    %1483 = vmatpush1.msra.mxu0 %v1482
    %1484 = vmatprep.subr.mxu0 0.0
    %v1485 = vand.u32 %v1189, 4294901760
    %v1486 = vsub.f32 %v1189, %v1485
    %1487 = vmatpush1.msra.mxu0 %v1486
    %1488 = vmatprep.subr.mxu0 0.0
    %v1489 = vand.u32 %v1190, 4294901760
    %v1490 = vsub.f32 %v1190, %v1489
    %1491 = vmatpush1.msra.mxu0 %v1490
    %1492 = vmatprep.subr.mxu0 0.0
    %v1493 = vand.u32 %v1191, 4294901760
    %v1494 = vsub.f32 %v1191, %v1493
    %1495 = vmatpush1.msra.mxu0 %v1494
    %1496 = vmatprep.subr.mxu0 0.0
    %v1497 = vand.u32 %v1192, 4294901760
    %v1498 = vsub.f32 %v1192, %v1497
    %1499 = vmatpush1.msra.mxu0 %v1498
    %1500 = vmatprep.subr.mxu0 0.0
    %v1501 = vand.u32 %v1193, 4294901760
    %v1502 = vsub.f32 %v1193, %v1501
    %1503 = vmatpush1.msra.mxu0 %v1502
    %1504 = vmatprep.subr.mxu0 0.0
    %v1505 = vand.u32 %v1194, 4294901760
    %v1506 = vsub.f32 %v1194, %v1505
    %1507 = vmatpush1.msra.mxu0 %v1506
    %1508 = vmatprep.subr.mxu0 0.0
    %1509 = vmatpush1.msra.mxu0 0.0
    %1510 = vmatprep.subr.mxu0 0.0
    %1511 = vmatpush1.msra.mxu0 0.0
    %1512 = vmatprep.subr.mxu0 0.0
    %1513 = vmatpush1.msra.mxu0 0.0
    %1514 = vmatprep.subr.mxu0 0.0
    %1515 = vmatpush1.msra.mxu0 0.0
    %1516 = vmatprep.subr.mxu0 0.0
    %1517 = vmatpush1.msra.mxu0 0.0
    %1518 = vmatprep.subr.mxu0 0.0
    %1519 = vmatpush1.msra.mxu0 0.0
    %1520 = vmatprep.subr.mxu0 0.0
    %1521 = vmatpush1.msra.mxu0 0.0
    %1522 = vmatprep.subr.mxu0 0.0
    %1523 = vmatpush1.msra.mxu0 0.0
    %1524 = vmatprep.subr.mxu0 0.0
    %1525 = vmatpush1.msra.mxu0 0.0
    %1526 = vmatprep.subr.mxu0 0.0
    %1527 = vmatpush1.msra.mxu0 0.0
    %1528 = vmatprep.subr.mxu0 0.0
    %1529 = vmatpush1.msra.mxu0 0.0
    %1530 = vmatprep.subr.mxu0 0.0
    %1531 = vmatpush1.msra.mxu0 0.0
    %1532 = vmatprep.subr.mxu0 0.0
    %1533 = vmatpush1.msra.mxu0 0.0
    %1534 = vmatprep.subr.mxu0 0.0
    %1535 = vmatpush1.msra.mxu0 0.0
    %1536 = vmatprep.subr.mxu0 0.0
    %1537 = vmatpush1.msra.mxu0 0.0
    %1538 = vmatprep.subr.mxu0 0.0
    %1539 = vmatpush1.msra.mxu0 0.0
    %1540 = vmatprep.mubr.f32.mxu0 0.0
    %v1541 = vand.u32 %v1178, 4294901760
    %v1542 = vsub.f32 %v1178, %v1541
    %1543 = vmatmul.mubr.f32.gmra.mrb[0].mxu0 %v1542
    %v1544 = vpop.f32.mrb[0].mxu0
    %v1545 = vadd.f32 %v1441, %v1544
    %v1546 = vpop.f32.mrb[0].mxu0
    %1547 = vdwg.mxu0
    %1548 = vmatprep.subr.mxu0 0.0
    %v1549 = vand.u32 %v1179, 4294901760
    %1550 = vmatpush1.msra.mxu0 %v1549
    %1551 = vmatprep.subr.mxu0 0.0
    %v1552 = vand.u32 %v1180, 4294901760
    %1553 = vmatpush1.msra.mxu0 %v1552
    %1554 = vmatprep.subr.mxu0 0.0
    %v1555 = vand.u32 %v1181, 4294901760
    %1556 = vmatpush1.msra.mxu0 %v1555
    %1557 = vmatprep.subr.mxu0 0.0
    %v1558 = vand.u32 %v1182, 4294901760
    %1559 = vmatpush1.msra.mxu0 %v1558
    %1560 = vmatprep.subr.mxu0 0.0
    %v1561 = vand.u32 %v1183, 4294901760
    %1562 = vmatpush1.msra.mxu0 %v1561
    %1563 = vmatprep.subr.mxu0 0.0
    %v1564 = vand.u32 %v1184, 4294901760
    %1565 = vmatpush1.msra.mxu0 %v1564
    %1566 = vmatprep.subr.mxu0 0.0
    %v1567 = vand.u32 %v1185, 4294901760
    %1568 = vmatpush1.msra.mxu0 %v1567
    %1569 = vmatprep.subr.mxu0 0.0
    %v1570 = vand.u32 %v1186, 4294901760
    %1571 = vmatpush1.msra.mxu0 %v1570
    %1572 = vmatprep.subr.mxu0 0.0
    %v1573 = vand.u32 %v1187, 4294901760
    %1574 = vmatpush1.msra.mxu0 %v1573
    %1575 = vmatprep.subr.mxu0 0.0
    %v1576 = vand.u32 %v1188, 4294901760
    %1577 = vmatpush1.msra.mxu0 %v1576
    %1578 = vmatprep.subr.mxu0 0.0
    %v1579 = vand.u32 %v1189, 4294901760
    %1580 = vmatpush1.msra.mxu0 %v1579
    %1581 = vmatprep.subr.mxu0 0.0
    %v1582 = vand.u32 %v1190, 4294901760
    %1583 = vmatpush1.msra.mxu0 %v1582
    %1584 = vmatprep.subr.mxu0 0.0
    %v1585 = vand.u32 %v1191, 4294901760
    %1586 = vmatpush1.msra.mxu0 %v1585
    %1587 = vmatprep.subr.mxu0 0.0
    %v1588 = vand.u32 %v1192, 4294901760
    %1589 = vmatpush1.msra.mxu0 %v1588
    %1590 = vmatprep.subr.mxu0 0.0
    %v1591 = vand.u32 %v1193, 4294901760
    %1592 = vmatpush1.msra.mxu0 %v1591
    %1593 = vmatprep.subr.mxu0 0.0
    %v1594 = vand.u32 %v1194, 4294901760
    %1595 = vmatpush1.msra.mxu0 %v1594
    %1596 = vmatprep.subr.mxu0 0.0
    %1597 = vmatpush1.msra.mxu0 0.0
    %1598 = vmatprep.subr.mxu0 0.0
    %1599 = vmatpush1.msra.mxu0 0.0
    %1600 = vmatprep.subr.mxu0 0.0
    %1601 = vmatpush1.msra.mxu0 0.0
    %1602 = vmatprep.subr.mxu0 0.0
    %1603 = vmatpush1.msra.mxu0 0.0
    %1604 = vmatprep.subr.mxu0 0.0
    %1605 = vmatpush1.msra.mxu0 0.0
    %1606 = vmatprep.subr.mxu0 0.0
    %1607 = vmatpush1.msra.mxu0 0.0
    %1608 = vmatprep.subr.mxu0 0.0
    %1609 = vmatpush1.msra.mxu0 0.0
    %1610 = vmatprep.subr.mxu0 0.0
    %1611 = vmatpush1.msra.mxu0 0.0
    %1612 = vmatprep.subr.mxu0 0.0
    %1613 = vmatpush1.msra.mxu0 0.0
    %1614 = vmatprep.subr.mxu0 0.0
    %1615 = vmatpush1.msra.mxu0 0.0
    %1616 = vmatprep.subr.mxu0 0.0
    %1617 = vmatpush1.msra.mxu0 0.0
    %1618 = vmatprep.subr.mxu0 0.0
    %1619 = vmatpush1.msra.mxu0 0.0
    %1620 = vmatprep.subr.mxu0 0.0
    %1621 = vmatpush1.msra.mxu0 0.0
    %1622 = vmatprep.subr.mxu0 0.0
    %1623 = vmatpush1.msra.mxu0 0.0
    %1624 = vmatprep.subr.mxu0 0.0
    %1625 = vmatpush1.msra.mxu0 0.0
    %1626 = vmatprep.subr.mxu0 0.0
    %1627 = vmatpush1.msra.mxu0 0.0
    %1628 = vmatprep.mubr.f32.mxu0 0.0
    %v1629 = vand.u32 %v1178, 4294901760
    %v1630 = vsub.f32 %v1178, %v1629
    %v1631 = vand.u32 %v1630, 4294901760
    %1632 = vmatmul.mubr.f32.gmra.mrb[0].mxu0 %v1631
    %v1633 = vpop.f32.mrb[0].mxu0
    %v1634 = vadd.f32 %v1545, %v1633
    %v1635 = vpop.f32.mrb[0].mxu0
    %1636 = vdwg.mxu0
    %1637 = vmatprep.subr.mxu0 0.0
    %v1638 = vand.u32 %v1179, 4294901760
    %v1639 = vsub.f32 %v1179, %v1638
    %v1640 = vand.u32 %v1639, 4294901760
    %1641 = vmatpush1.msra.mxu0 %v1640
    %1642 = vmatprep.subr.mxu0 0.0
    %v1643 = vand.u32 %v1180, 4294901760
    %v1644 = vsub.f32 %v1180, %v1643
    %v1645 = vand.u32 %v1644, 4294901760
    %1646 = vmatpush1.msra.mxu0 %v1645
    %1647 = vmatprep.subr.mxu0 0.0
    %v1648 = vand.u32 %v1181, 4294901760
    %v1649 = vsub.f32 %v1181, %v1648
    %v1650 = vand.u32 %v1649, 4294901760
    %1651 = vmatpush1.msra.mxu0 %v1650
    %1652 = vmatprep.subr.mxu0 0.0
    %v1653 = vand.u32 %v1182, 4294901760
    %v1654 = vsub.f32 %v1182, %v1653
    %v1655 = vand.u32 %v1654, 4294901760
    %1656 = vmatpush1.msra.mxu0 %v1655
    %1657 = vmatprep.subr.mxu0 0.0
    %v1658 = vand.u32 %v1183, 4294901760
    %v1659 = vsub.f32 %v1183, %v1658
    %v1660 = vand.u32 %v1659, 4294901760
    %1661 = vmatpush1.msra.mxu0 %v1660
    %1662 = vmatprep.subr.mxu0 0.0
    %v1663 = vand.u32 %v1184, 4294901760
    %v1664 = vsub.f32 %v1184, %v1663
    %v1665 = vand.u32 %v1664, 4294901760
    %1666 = vmatpush1.msra.mxu0 %v1665
    %1667 = vmatprep.subr.mxu0 0.0
    %v1668 = vand.u32 %v1185, 4294901760
    %v1669 = vsub.f32 %v1185, %v1668
    %v1670 = vand.u32 %v1669, 4294901760
    %1671 = vmatpush1.msra.mxu0 %v1670
    %1672 = vmatprep.subr.mxu0 0.0
    %v1673 = vand.u32 %v1186, 4294901760
    %v1674 = vsub.f32 %v1186, %v1673
    %v1675 = vand.u32 %v1674, 4294901760
    %1676 = vmatpush1.msra.mxu0 %v1675
    %1677 = vmatprep.subr.mxu0 0.0
    %v1678 = vand.u32 %v1187, 4294901760
    %v1679 = vsub.f32 %v1187, %v1678
    %v1680 = vand.u32 %v1679, 4294901760
    %1681 = vmatpush1.msra.mxu0 %v1680
    %1682 = vmatprep.subr.mxu0 0.0
    %v1683 = vand.u32 %v1188, 4294901760
    %v1684 = vsub.f32 %v1188, %v1683
    %v1685 = vand.u32 %v1684, 4294901760
    %1686 = vmatpush1.msra.mxu0 %v1685
    %1687 = vmatprep.subr.mxu0 0.0
    %v1688 = vand.u32 %v1189, 4294901760
    %v1689 = vsub.f32 %v1189, %v1688
    %v1690 = vand.u32 %v1689, 4294901760
    %1691 = vmatpush1.msra.mxu0 %v1690
    %1692 = vmatprep.subr.mxu0 0.0
    %v1693 = vand.u32 %v1190, 4294901760
    %v1694 = vsub.f32 %v1190, %v1693
    %v1695 = vand.u32 %v1694, 4294901760
    %1696 = vmatpush1.msra.mxu0 %v1695
    %1697 = vmatprep.subr.mxu0 0.0
    %v1698 = vand.u32 %v1191, 4294901760
    %v1699 = vsub.f32 %v1191, %v1698
    %v1700 = vand.u32 %v1699, 4294901760
    %1701 = vmatpush1.msra.mxu0 %v1700
    %1702 = vmatprep.subr.mxu0 0.0
    %v1703 = vand.u32 %v1192, 4294901760
    %v1704 = vsub.f32 %v1192, %v1703
    %v1705 = vand.u32 %v1704, 4294901760
    %1706 = vmatpush1.msra.mxu0 %v1705
    %1707 = vmatprep.subr.mxu0 0.0
    %v1708 = vand.u32 %v1193, 4294901760
    %v1709 = vsub.f32 %v1193, %v1708
    %v1710 = vand.u32 %v1709, 4294901760
    %1711 = vmatpush1.msra.mxu0 %v1710
    %1712 = vmatprep.subr.mxu0 0.0
    %v1713 = vand.u32 %v1194, 4294901760
    %v1714 = vsub.f32 %v1194, %v1713
    %v1715 = vand.u32 %v1714, 4294901760
    %1716 = vmatpush1.msra.mxu0 %v1715
    %1717 = vmatprep.subr.mxu0 0.0
    %1718 = vmatpush1.msra.mxu0 0.0
    %1719 = vmatprep.subr.mxu0 0.0
    %1720 = vmatpush1.msra.mxu0 0.0
    %1721 = vmatprep.subr.mxu0 0.0
    %1722 = vmatpush1.msra.mxu0 0.0
    %1723 = vmatprep.subr.mxu0 0.0
    %1724 = vmatpush1.msra.mxu0 0.0
    %1725 = vmatprep.subr.mxu0 0.0
    %1726 = vmatpush1.msra.mxu0 0.0
    %1727 = vmatprep.subr.mxu0 0.0
    %1728 = vmatpush1.msra.mxu0 0.0
    %1729 = vmatprep.subr.mxu0 0.0
    %1730 = vmatpush1.msra.mxu0 0.0
    %1731 = vmatprep.subr.mxu0 0.0
    %1732 = vmatpush1.msra.mxu0 0.0
    %1733 = vmatprep.subr.mxu0 0.0
    %1734 = vmatpush1.msra.mxu0 0.0
    %1735 = vmatprep.subr.mxu0 0.0
    %1736 = vmatpush1.msra.mxu0 0.0
    %1737 = vmatprep.subr.mxu0 0.0
    %1738 = vmatpush1.msra.mxu0 0.0
    %1739 = vmatprep.subr.mxu0 0.0
    %1740 = vmatpush1.msra.mxu0 0.0
    %1741 = vmatprep.subr.mxu0 0.0
    %1742 = vmatpush1.msra.mxu0 0.0
    %1743 = vmatprep.subr.mxu0 0.0
    %1744 = vmatpush1.msra.mxu0 0.0
    %1745 = vmatprep.subr.mxu0 0.0
    %1746 = vmatpush1.msra.mxu0 0.0
    %1747 = vmatprep.subr.mxu0 0.0
    %1748 = vmatpush1.msra.mxu0 0.0
    %1749 = vmatprep.mubr.f32.mxu0 0.0
    %v1750 = vand.u32 %v1178, 4294901760
    %1751 = vmatmul.mubr.f32.gmra.mrb[0].mxu0 %v1750
    %v1752 = vpop.f32.mrb[0].mxu0
    %v1753 = vadd.f32 %v1634, %v1752
    %v1754 = vpop.f32.mrb[0].mxu0
    %1755 = vdwg.mxu0
    %1756 = vmatprep.subr.mxu0 0.0
    %v1757 = vand.u32 %v1179, 4294901760
    %1758 = vmatpush1.msra.mxu0 %v1757
    %1759 = vmatprep.subr.mxu0 0.0
    %v1760 = vand.u32 %v1180, 4294901760
    %1761 = vmatpush1.msra.mxu0 %v1760
    %1762 = vmatprep.subr.mxu0 0.0
    %v1763 = vand.u32 %v1181, 4294901760
    %1764 = vmatpush1.msra.mxu0 %v1763
    %1765 = vmatprep.subr.mxu0 0.0
    %v1766 = vand.u32 %v1182, 4294901760
    %1767 = vmatpush1.msra.mxu0 %v1766
    %1768 = vmatprep.subr.mxu0 0.0
    %v1769 = vand.u32 %v1183, 4294901760
    %1770 = vmatpush1.msra.mxu0 %v1769
    %1771 = vmatprep.subr.mxu0 0.0
    %v1772 = vand.u32 %v1184, 4294901760
    %1773 = vmatpush1.msra.mxu0 %v1772
    %1774 = vmatprep.subr.mxu0 0.0
    %v1775 = vand.u32 %v1185, 4294901760
    %1776 = vmatpush1.msra.mxu0 %v1775
    %1777 = vmatprep.subr.mxu0 0.0
    %v1778 = vand.u32 %v1186, 4294901760
    %1779 = vmatpush1.msra.mxu0 %v1778
    %1780 = vmatprep.subr.mxu0 0.0
    %v1781 = vand.u32 %v1187, 4294901760
    %1782 = vmatpush1.msra.mxu0 %v1781
    %1783 = vmatprep.subr.mxu0 0.0
    %v1784 = vand.u32 %v1188, 4294901760
    %1785 = vmatpush1.msra.mxu0 %v1784
    %1786 = vmatprep.subr.mxu0 0.0
    %v1787 = vand.u32 %v1189, 4294901760
    %1788 = vmatpush1.msra.mxu0 %v1787
    %1789 = vmatprep.subr.mxu0 0.0
    %v1790 = vand.u32 %v1190, 4294901760
    %1791 = vmatpush1.msra.mxu0 %v1790
    %1792 = vmatprep.subr.mxu0 0.0
    %v1793 = vand.u32 %v1191, 4294901760
    %1794 = vmatpush1.msra.mxu0 %v1793
    %1795 = vmatprep.subr.mxu0 0.0
    %v1796 = vand.u32 %v1192, 4294901760
    %1797 = vmatpush1.msra.mxu0 %v1796
    %1798 = vmatprep.subr.mxu0 0.0
    %v1799 = vand.u32 %v1193, 4294901760
    %1800 = vmatpush1.msra.mxu0 %v1799
    %1801 = vmatprep.subr.mxu0 0.0
    %v1802 = vand.u32 %v1194, 4294901760
    %1803 = vmatpush1.msra.mxu0 %v1802
    %1804 = vmatprep.subr.mxu0 0.0
    %1805 = vmatpush1.msra.mxu0 0.0
    %1806 = vmatprep.subr.mxu0 0.0
    %1807 = vmatpush1.msra.mxu0 0.0
    %1808 = vmatprep.subr.mxu0 0.0
    %1809 = vmatpush1.msra.mxu0 0.0
    %1810 = vmatprep.subr.mxu0 0.0
    %1811 = vmatpush1.msra.mxu0 0.0
    %1812 = vmatprep.subr.mxu0 0.0
    %1813 = vmatpush1.msra.mxu0 0.0
    %1814 = vmatprep.subr.mxu0 0.0
    %1815 = vmatpush1.msra.mxu0 0.0
    %1816 = vmatprep.subr.mxu0 0.0
    %1817 = vmatpush1.msra.mxu0 0.0
    %1818 = vmatprep.subr.mxu0 0.0
    %1819 = vmatpush1.msra.mxu0 0.0
    %1820 = vmatprep.subr.mxu0 0.0
    %1821 = vmatpush1.msra.mxu0 0.0
    %1822 = vmatprep.subr.mxu0 0.0
    %1823 = vmatpush1.msra.mxu0 0.0
    %1824 = vmatprep.subr.mxu0 0.0
    %1825 = vmatpush1.msra.mxu0 0.0
    %1826 = vmatprep.subr.mxu0 0.0
    %1827 = vmatpush1.msra.mxu0 0.0
    %1828 = vmatprep.subr.mxu0 0.0
    %1829 = vmatpush1.msra.mxu0 0.0
    %1830 = vmatprep.subr.mxu0 0.0
    %1831 = vmatpush1.msra.mxu0 0.0
    %1832 = vmatprep.subr.mxu0 0.0
    %1833 = vmatpush1.msra.mxu0 0.0
    %1834 = vmatprep.subr.mxu0 0.0
    %1835 = vmatpush1.msra.mxu0 0.0
    %1836 = vmatprep.mubr.f32.mxu0 0.0
    %v1837 = vand.u32 %v1178, 4294901760
    %1838 = vmatmul.mubr.f32.gmra.mrb[0].mxu0 %v1837
    %v1839 = vpop.f32.mrb[0].mxu0
    %v1840 = vadd.f32 %v1753, %v1839
    %v1841 = vpop.f32.mrb[0].mxu0
    %1842 = vdwg.mxu0
    %v1843 = vtanh.pop %v1840
    %1844 = vst [vmem:[%s7] sm:$0xff] %v1843
    // Predicated region
    $region38: #{actor_forward.1} parent=1 // pred_check
      _
    $region39: #{actor_forward.1} parent=1 // pred_check_branch
      %1846 = sbr.rel (0) target = $region41
    $region40: #{actor_forward.1} parent=1 // pred_region
      _
    $region41: #{actor_forward.1} parent=1 // pred_fallthru
      _
    // Predicated region
    $region42: #{actor_forward.1} parent=1 // pred_check
      _
    $region43: #{actor_forward.1} parent=1 // pred_check_branch
      %1848 = sbr.rel (0) target = $region45
    $region44: #{actor_forward.1} parent=1 // pred_region
      _
    $region45: #{actor_forward.1} parent=1 // pred_fallthru
      _
    %1849 = vsyncpa [#allocation3], 1
    %1850 = vsyncpa [#allocation5], 1

</llo_original>
